<compile_context>
chip_gen: v7x
topology: tpu7x:2x2x1
jax: 0.10.0
libtpu: 0.0.40
codegen_flags: <defaults>
</compile_context>

<pallas_src>
import functools

import jax
import jax.numpy as jnp
from jax import lax
from jax.experimental import pallas as pl
from jax.experimental.pallas import tpu as pltpu


# ---------------------------------------------------------------------------
# Helpers
# ---------------------------------------------------------------------------
def _round_up(x, m):
    return (x + m - 1) // m * m


def _tap(parity, delta):
    # Which tap of the (flipped, conv-form) 3-tap filter contributes to output
    # parity `parity` from input neighbor offset `delta`; None = no contribution.
    if parity == 0:
        return 1 if delta == 0 else None
    return 0 if delta == 0 else 2


def _build_phase_weight(w_t):
    """(Cin, Cout, 3, 3) ConvTranspose2d weight -> (4, 4*Cout, Cin) per-shift weights.

    Index [d, p*Cout + c, ci] with d = dh*2+dw (neighbor shift) and p = ph*2+pw
    (output parity / sub-pixel phase)."""
    Cin, Cout, K, _ = w_t.shape
    # flipped kernel in conv form: wf[kh, kw, ci, co]
    wf = jnp.transpose(w_t[:, :, ::-1, ::-1], (2, 3, 0, 1)).astype(jnp.float32)
    phases = []
    for ph in range(2):
        for pw in range(2):
            shifts = []
            for dh in range(2):
                for dw in range(2):
                    kh, kw = _tap(ph, dh), _tap(pw, dw)
                    if kh is None or kw is None:
                        shifts.append(jnp.zeros((Cout, Cin), jnp.float32))
                    else:
                        shifts.append(wf[kh, kw].T)          # (Cout, Cin)
            phases.append(jnp.stack(shifts, axis=0))          # (4, Cout, Cin)
    return jnp.concatenate(phases, axis=1)                    # (4, 4*Cout, Cin)


def _default_blk_m(Cin, Cout, n_cols, halo_cols):
    # VMEM-budgeted block size (HBM-bound kernel; ~0.35us fixed per-step overhead
    # wants big blocks).  Keep G >= 2 so v7x megacore can shard the parallel axis.
    per_col = ((4 * Cout) * 4 * 3        # f32 conv + temporaries
               + (4 * Cout) * 2 * 2      # bf16 output block, double buffered
               + Cin * 2 * 2             # bf16 input block, double buffered
               + Cin * 2 * 5)            # ext + shifted slabs (bf16)
    cap = max(128, (18 * 1024 * 1024 // per_col) // 128 * 128)
    half = _round_up((n_cols + 1) // 2, 128)
    return max(halo_cols, min(32768, cap, half))


# ---------------------------------------------------------------------------
# Wrapper (kernels are closures so they can capture blk_m / row stride)
# ---------------------------------------------------------------------------
@functools.partial(jax.jit, static_argnames=("eps", "blk_m", "mxu_dtype"))
def upsampler_block(x_nchw, w_t, bias, gamma, beta, *, eps=1e-3, blk_m=None,
                    mxu_dtype=jnp.bfloat16):
    """Forward pass of UpsamplerBlock.

    x_nchw: (N, Cin, H, W); w_t: (Cin, Cout, 3, 3) PyTorch ConvTranspose2d weight;
    bias/gamma/beta: (Cout,). Returns (N, Cout, 2H, 2W) float32.
    """
    N, Cin, H, W = x_nchw.shape
    Cin_w, Cout, K, K2 = w_t.shape
    assert Cin == Cin_w and K == 3 and K2 == 3
    del bias  # cancels exactly under training-mode (batch-statistics) BatchNorm

    f32 = jnp.float32
    Ho, Wo = 2 * H, 2 * W
    Wp = W + 1                       # row stride of the flattened padded image
    Mv = N * (H + 1) * (W + 1)       # flat columns incl. 1-pixel bottom/right zero pad
    halo_cols = _round_up(W + 2, 128)

    if blk_m is None:
        blk_m = _default_blk_m(Cin, Cout, Mv, halo_cols)
    blk_m = max(int(blk_m), halo_cols)
    assert blk_m % 128 == 0
    M_pad = _round_up(Mv, blk_m)
    G = M_pad // blk_m

    # ---- channels-leading, spatially zero-padded, bf16, pixels on lanes ------
    xp = jnp.pad(x_nchw.astype(mxu_dtype), ((0, 0), (0, 0), (0, 1), (0, 1)))
    X = jnp.transpose(xp, (1, 0, 2, 3)).reshape(Cin, Mv)
    X = jnp.pad(X, ((0, 0), (0, M_pad + blk_m - Mv)))            # (Cin, (G+1)*blk_m)
    # halo[g] = first halo_cols columns AFTER block g (needed by the +1/+Wp/+Wp+1 shifts)
    halo = jnp.transpose(
        X.reshape(Cin, G + 1, blk_m)[:, 1:, :halo_cols], (1, 0, 2))   # (G, Cin, halo_cols)

    # valid-output-column mask: 1 for real pixels, 0 for pad row/col + flat tail
    vw = jnp.arange(W + 1) < W
    vh = jnp.arange(H + 1) < H
    mask = jnp.tile((vh[:, None] & vw[None, :]).reshape(1, -1).astype(f32), (1, N))
    mask = jnp.pad(mask, ((0, 0), (0, M_pad - Mv)))              # (1, M_pad)

    W4_f32 = _build_phase_weight(w_t)                            # (4, 4*Cout, Cin)
    W4 = W4_f32.astype(mxu_dtype)

    cparams = pltpu.CompilerParams(dimension_semantics=("parallel",),
                                   vmem_limit_bytes=32 * 1024 * 1024)
    x_spec = pl.BlockSpec((Cin, blk_m), lambda g: (0, g))
    halo_spec = pl.BlockSpec((1, Cin, halo_cols), lambda g: (g, 0, 0))
    w_spec = pl.BlockSpec((4, 4 * Cout, Cin), lambda g: (0, 0, 0))

    def _shifted_conv(x_ref, halo_ref, w_ref):
        # one lane-dense load + tiny halo; 4 in-VMEM shifted views (static lane
        # slices, XLU/VPU work hidden under the DMA); 4 small MXU dots, f32 acc.
        ext = jnp.concatenate([x_ref[...], halo_ref[0]], axis=1)  # (Cin, blk_m+halo)
        conv = jnp.dot(w_ref[0], ext[:, 0:blk_m], preferred_element_type=f32)
        conv = conv + jnp.dot(w_ref[1], ext[:, 1:blk_m + 1],
                              preferred_element_type=f32)
        conv = conv + jnp.dot(w_ref[2], ext[:, Wp:Wp + blk_m],
                              preferred_element_type=f32)
        conv = conv + jnp.dot(w_ref[3], ext[:, Wp + 1:Wp + 1 + blk_m],
                              preferred_element_type=f32)
        return conv                                               # (4*Cout, blk_m) f32

    # ---- pass 1: conv + per-block centered statistics (sum, M2) --------------
    def _stats_kernel(x_ref, halo_ref, mask_ref, w_ref, stats_ref):
        conv = _shifted_conv(x_ref, halo_ref, w_ref)
        m = mask_ref[...]                                         # (1, blk_m) f32
        cnt = jnp.maximum(jnp.sum(m, axis=1, keepdims=True), 1.0)  # (1, 1)
        s1 = jnp.sum(conv * m, axis=1, keepdims=True)             # (4*Cout, 1)
        d = (conv - s1 / cnt) * m
        m2 = jnp.sum(d * d, axis=1, keepdims=True)                # (4*Cout, 1)
        stats_ref[0] = jnp.concatenate([s1, m2], axis=1)          # single store

    stats = pl.pallas_call(
        _stats_kernel,
        out_shape=jax.ShapeDtypeStruct((G, 4 * Cout, 2), f32),
        grid=(G,),
        in_specs=[x_spec, halo_spec,
                  pl.BlockSpec((1, blk_m), lambda g: (0, g)),
                  w_spec],
        out_specs=pl.BlockSpec((1, 4 * Cout, 2), lambda g: (g, 0, 0)),
        compiler_params=cparams,
    )(X, halo, mask, W4)

    # ---- tiny cross-block / cross-phase combine (Chan et al.), f32 -----------
    cnt_g = mask.reshape(G, blk_m).sum(axis=1)                    # (G,)
    s1 = stats[..., 0].reshape(G, 4, Cout)
    m2 = stats[..., 1].reshape(G, 4, Cout)
    n_g = cnt_g.reshape(G, 1, 1)
    n_tot = 4.0 * jnp.sum(cnt_g)                                  # == N*Ho*Wo
    mean = jnp.sum(s1, axis=(0, 1)) / n_tot                       # (Cout,)
    mu_gp = s1 / jnp.maximum(n_g, 1.0)
    var = (jnp.sum(m2, axis=(0, 1))
           + jnp.sum(n_g * (mu_gp - mean) ** 2, axis=(0, 1))) / n_tot
    var = jnp.maximum(var, 0.0)
    scale = gamma.astype(f32) * lax.rsqrt(var + eps)              # (Cout,)
    shift = beta.astype(f32) - mean * scale
    # fold scale into the pass-2 weights (rows are phase-major: p*Cout + c)
    W4_scaled = (W4_f32 * jnp.tile(scale, 4)[None, :, None]).astype(mxu_dtype)
    shift_rows = jnp.tile(shift, 4).reshape(4 * Cout, 1)

    # ---- pass 2: conv (scale folded) + shift + ReLU, bf16 lane-dense stores ---
    def _conv_bn_relu_kernel(x_ref, halo_ref, w_ref, shift_ref, o_ref):
        conv = _shifted_conv(x_ref, halo_ref, w_ref)
        o_ref[...] = jnp.maximum(conv + shift_ref[...], 0.0).astype(o_ref.dtype)

    YT = pl.pallas_call(
        _conv_bn_relu_kernel,
        out_shape=jax.ShapeDtypeStruct((4 * Cout, M_pad), mxu_dtype),
        grid=(G,),
        in_specs=[x_spec, halo_spec, w_spec,
                  pl.BlockSpec((4 * Cout, 1), lambda g: (0, 0))],
        out_specs=pl.BlockSpec((4 * Cout, blk_m), lambda g: (0, g)),
        compiler_params=cparams,
    )(X, halo, W4_scaled, shift_rows)

    # NOTE: padded / junk columns of YT hold relu(shift) or garbage -- they are
    # sliced off here and must never be consumed from the raw YT buffer.
    # Phase interleave + NCHW output in one bf16 transpose; f32 cast fuses at the end.
    y = YT[:, :Mv].reshape(2, 2, Cout, N, H + 1, W + 1)[..., :H, :W]
    y = jnp.transpose(y, (3, 2, 4, 0, 5, 1))                      # (n, co, h, ph, w, pw)
    return y.reshape(N, Cout, Ho, Wo).astype(f32)


# ---------------------------------------------------------------------------
# Pure-JAX reference (PyTorch semantics), used for validation
# ---------------------------------------------------------------------------
def _reference(x_nchw, w_t, bias, gamma, beta, *, eps=1e-3):
    w_conv = jnp.transpose(w_t[:, :, ::-1, ::-1], (1, 0, 2, 3))   # OIHW
    y = lax.conv_general_dilated(
        x_nchw, w_conv, window_strides=(1, 1), padding=((1, 2), (1, 2)),
        lhs_dilation=(2, 2), dimension_numbers=("NCHW", "OIHW", "NCHW"),
        preferred_element_type=jnp.float32)
    y = y + bias[None, :, None, None]
    mean = jnp.mean(y, axis=(0, 2, 3), keepdims=True)
    var = jnp.mean((y - mean) ** 2, axis=(0, 2, 3), keepdims=True)
    y = (y - mean) * lax.rsqrt(var + eps) * gamma[None, :, None, None] \
        + beta[None, :, None, None]
    return jnp.maximum(y, 0.0)


if __name__ == "__main__":
    N, Cin, Cout, H, W = 2, 4, 8, 16, 16
    key = jax.random.PRNGKey(0)
    kx, kw, kb, kg, kbeta = jax.random.split(key, 5)

    x = jax.random.normal(kx, (N, Cin, H, W), jnp.float32)
    w_t = 0.1 * jax.random.normal(kw, (Cin, Cout, 3, 3), jnp.float32)
    bias = 0.1 * jax.random.normal(kb, (Cout,), jnp.float32)
    gamma = 1.0 + 0.1 * jax.random.normal(kg, (Cout,), jnp.float32)
    beta = 0.1 * jax.random.normal(kbeta, (Cout,), jnp.float32)

    ref = jax.block_until_ready(_reference(x, w_t, bias, gamma, beta))

    # small explicit blk_m -> multi-step grid exercises pipelining, halo stitching, masks
    out = jax.block_until_ready(upsampler_block(x, w_t, bias, gamma, beta, blk_m=256))
    assert out.shape == (N, Cout, 2 * H, 2 * W), out.shape
    err = float(jnp.max(jnp.abs(out - ref)))
    assert jnp.allclose(out, ref, atol=5e-2, rtol=5e-2), err

    # default (auto) block-size path; keeps G >= 2 for v7x megacore
    out2 = jax.block_until_ready(upsampler_block(x, w_t, bias, gamma, beta))
    err2 = float(jnp.max(jnp.abs(out2 - ref)))
    assert jnp.allclose(out2, ref, atol=5e-2, rtol=5e-2), err2

    print("KERNEL_OK")
</pallas_src>

<mosaic_0001>
module attributes {stable_mosaic.version = 11 : i64} {
  func.func @_stats_kernel(%arg0: i32, %arg1: memref<4x256xbf16, #tpu.memory_space<vmem>>, %arg2: memref<1x4x128xbf16, #tpu.memory_space<vmem>>, %arg3: memref<1x256xf32, #tpu.memory_space<vmem>>, %arg4: memref<4x32x4xbf16, #tpu.memory_space<vmem>>, %arg5: memref<1x32x2xf32, #tpu.memory_space<vmem>>) attributes {dimension_semantics = [#tpu.dimension_semantics<parallel>], iteration_bounds = array<i64: 3>, scalar_prefetch = 0 : i64, scratch_operands = 0 : i64, tpu.core_type = #tpu.core_type<tc>, window_params = [{transform_indices = @transform_0, window_bounds = array<i64: 4, 256>}, {transform_indices = @transform_1, window_bounds = array<i64: 1, 4, 128>}, {transform_indices = @transform_2, window_bounds = array<i64: 1, 256>}, {pipeline_mode = #tpu.pipeline_mode<synchronous>, transform_indices = @transform_3, window_bounds = array<i64: 4, 32, 4>}, {transform_indices = @transform_4, window_bounds = array<i64: 1, 32, 2>}]} {
    %c0 = arith.constant 0 : index
    %c0_0 = arith.constant 0 : index
    %0 = vector.load %arg1[%c0, %c0_0] : memref<4x256xbf16, #tpu.memory_space<vmem>>, vector<4x256xbf16>
    %c0_1 = arith.constant 0 : index
    %c0_2 = arith.constant 0 : index
    %c0_3 = arith.constant 0 : index
    %1 = vector.load %arg2[%c0_1, %c0_2, %c0_3] : memref<1x4x128xbf16, #tpu.memory_space<vmem>>, vector<1x4x128xbf16>
    %2 = vector.shape_cast %1 : vector<1x4x128xbf16> to vector<4x128xbf16>
    %3 = tpu.concatenate %0, %2 in 1 : vector<4x256xbf16>, vector<4x128xbf16> -> vector<4x384xbf16>
    %c0_4 = arith.constant 0 : index
    %c0_5 = arith.constant 0 : index
    %c0_6 = arith.constant 0 : index
    %4 = vector.load %arg4[%c0_4, %c0_5, %c0_6] : memref<4x32x4xbf16, #tpu.memory_space<vmem>>, vector<1x32x4xbf16>
    %5 = vector.shape_cast %4 : vector<1x32x4xbf16> to vector<32x4xbf16>
    %6 = vector.extract_strided_slice %3 {offsets = [0, 0], sizes = [4, 256], strides = [1, 1]} : vector<4x384xbf16> to vector<4x256xbf16>
    %cst = arith.constant dense<0.000000e+00> : vector<32x256xf32>
    %7 = tpu.matmul %5, %6, %cst {dimension_numbers = #tpu.dot_dimension_numbers<[1], [0], [0], [1], [0, 0, 1, 1], [], []>} : vector<32x4xbf16>, vector<4x256xbf16>, vector<32x256xf32> -> vector<32x256xf32>
    %c1 = arith.constant 1 : index
    %c0_7 = arith.constant 0 : index
    %c0_8 = arith.constant 0 : index
    %8 = vector.load %arg4[%c1, %c0_7, %c0_8] : memref<4x32x4xbf16, #tpu.memory_space<vmem>>, vector<1x32x4xbf16>
    %9 = vector.shape_cast %8 : vector<1x32x4xbf16> to vector<32x4xbf16>
    %10 = vector.extract_strided_slice %3 {offsets = [0, 1], sizes = [4, 256], strides = [1, 1]} : vector<4x384xbf16> to vector<4x256xbf16>
    %cst_9 = arith.constant dense<0.000000e+00> : vector<32x256xf32>
    %11 = tpu.matmul %9, %10, %cst_9 {dimension_numbers = #tpu.dot_dimension_numbers<[1], [0], [0], [1], [0, 0, 1, 1], [], []>} : vector<32x4xbf16>, vector<4x256xbf16>, vector<32x256xf32> -> vector<32x256xf32>
    %12 = arith.addf %7, %11 : vector<32x256xf32>
    %c2 = arith.constant 2 : index
    %c0_10 = arith.constant 0 : index
    %c0_11 = arith.constant 0 : index
    %13 = vector.load %arg4[%c2, %c0_10, %c0_11] : memref<4x32x4xbf16, #tpu.memory_space<vmem>>, vector<1x32x4xbf16>
    %14 = vector.shape_cast %13 : vector<1x32x4xbf16> to vector<32x4xbf16>
    %15 = vector.extract_strided_slice %3 {offsets = [0, 17], sizes = [4, 256], strides = [1, 1]} : vector<4x384xbf16> to vector<4x256xbf16>
    %cst_12 = arith.constant dense<0.000000e+00> : vector<32x256xf32>
    %16 = tpu.matmul %14, %15, %cst_12 {dimension_numbers = #tpu.dot_dimension_numbers<[1], [0], [0], [1], [0, 0, 1, 1], [], []>} : vector<32x4xbf16>, vector<4x256xbf16>, vector<32x256xf32> -> vector<32x256xf32>
    %17 = arith.addf %12, %16 : vector<32x256xf32>
    %c3 = arith.constant 3 : index
    %c0_13 = arith.constant 0 : index
    %c0_14 = arith.constant 0 : index
    %18 = vector.load %arg4[%c3, %c0_13, %c0_14] : memref<4x32x4xbf16, #tpu.memory_space<vmem>>, vector<1x32x4xbf16>
    %19 = vector.shape_cast %18 : vector<1x32x4xbf16> to vector<32x4xbf16>
    %20 = vector.extract_strided_slice %3 {offsets = [0, 18], sizes = [4, 256], strides = [1, 1]} : vector<4x384xbf16> to vector<4x256xbf16>
    %cst_15 = arith.constant dense<0.000000e+00> : vector<32x256xf32>
    %21 = tpu.matmul %19, %20, %cst_15 {dimension_numbers = #tpu.dot_dimension_numbers<[1], [0], [0], [1], [0, 0, 1, 1], [], []>} : vector<32x4xbf16>, vector<4x256xbf16>, vector<32x256xf32> -> vector<32x256xf32>
    %22 = arith.addf %17, %21 : vector<32x256xf32>
    %c0_16 = arith.constant 0 : index
    %c0_17 = arith.constant 0 : index
    %23 = vector.load %arg3[%c0_16, %c0_17] : memref<1x256xf32, #tpu.memory_space<vmem>>, vector<1x256xf32>
    %cst_18 = arith.constant dense<0.000000e+00> : vector<1xf32>
    %24 = vector.multi_reduction <add>, %23, %cst_18 [1] : vector<1x256xf32> to vector<1xf32>
    %25 = vector.shape_cast %24 : vector<1xf32> to vector<1x1xf32>
    %cst_19 = arith.constant 1.000000e+00 : f32
    %26 = vector.broadcast %cst_19 : f32 to vector<1x1xf32>
    %27 = arith.maximumf %25, %26 : vector<1x1xf32>
    %28 = vector.broadcast %23 : vector<1x256xf32> to vector<32x256xf32>
    %29 = arith.mulf %22, %28 : vector<32x256xf32>
    %cst_20 = arith.constant dense<0.000000e+00> : vector<32xf32>
    %30 = vector.multi_reduction <add>, %29, %cst_20 [1] : vector<32x256xf32> to vector<32xf32>
    %31 = vector.shape_cast %30 : vector<32xf32> to vector<32x1xf32>
    %32 = vector.broadcast %27 : vector<1x1xf32> to vector<32x1xf32>
    %33 = arith.divf %31, %32 : vector<32x1xf32>
    %34 = vector.broadcast %33 : vector<32x1xf32> to vector<32x256xf32>
    %35 = arith.subf %22, %34 : vector<32x256xf32>
    %36 = vector.broadcast %23 : vector<1x256xf32> to vector<32x256xf32>
    %37 = arith.mulf %35, %36 : vector<32x256xf32>
    %38 = arith.mulf %37, %37 : vector<32x256xf32>
    %cst_21 = arith.constant dense<0.000000e+00> : vector<32xf32>
    %39 = vector.multi_reduction <add>, %38, %cst_21 [1] : vector<32x256xf32> to vector<32xf32>
    %40 = vector.shape_cast %39 : vector<32xf32> to vector<32x1xf32>
    %41 = tpu.concatenate %31, %40 in 1 : vector<32x1xf32>, vector<32x1xf32> -> vector<32x2xf32>
    %c0_22 = arith.constant 0 : index
    %c0_23 = arith.constant 0 : index
    %c0_24 = arith.constant 0 : index
    %42 = vector.load %arg5[%c0_22, %c0_23, %c0_24] : memref<1x32x2xf32, #tpu.memory_space<vmem>>, vector<1x32x2xf32>
    %43 = vector.shape_cast %42 : vector<1x32x2xf32> to vector<32x2xf32>
    %44 = vector.shape_cast %41 : vector<32x2xf32> to vector<1x32x2xf32>
    tpu.vector_store %arg5[%c0_22, %c0_23, %c0_24], %44 {strides = array<i32>} : memref<1x32x2xf32, #tpu.memory_space<vmem>>, vector<1x32x2xf32>,
    return
  }
  func.func @transform_0(%arg0: i32) -> (i32, i32) {
    %c0_i32 = arith.constant 0 : i32
    %c0_i32_0 = arith.constant 0 : i32
    return %c0_i32, %arg0 : i32, i32
  }
  func.func @transform_1(%arg0: i32) -> (i32, i32, i32) {
    %c0_i32 = arith.constant 0 : i32
    %c0_i32_0 = arith.constant 0 : i32
    %c0_i32_1 = arith.constant 0 : i32
    return %arg0, %c0_i32, %c0_i32_0 : i32, i32, i32
  }
  func.func @transform_2(%arg0: i32) -> (i32, i32) {
    %c0_i32 = arith.constant 0 : i32
    %c0_i32_0 = arith.constant 0 : i32
    return %c0_i32, %arg0 : i32, i32
  }
  func.func @transform_3(%arg0: i32) -> (i32, i32, i32) {
    %c0_i32 = arith.constant 0 : i32
    %c0_i32_0 = arith.constant 0 : i32
    %c0_i32_1 = arith.constant 0 : i32
    %c0_i32_2 = arith.constant 0 : i32
    return %c0_i32, %c0_i32_0, %c0_i32_1 : i32, i32, i32
  }
  func.func @transform_4(%arg0: i32) -> (i32, i32, i32) {
    %c0_i32 = arith.constant 0 : i32
    %c0_i32_0 = arith.constant 0 : i32
    %c0_i32_1 = arith.constant 0 : i32
    return %arg0, %c0_i32, %c0_i32_0 : i32, i32, i32
  }
}

module attributes {stable_mosaic.version = 11 : i64} {
  func.func @_conv_bn_relu_kernel(%arg0: i32, %arg1: memref<4x256xbf16, #tpu.memory_space<vmem>>, %arg2: memref<1x4x128xbf16, #tpu.memory_space<vmem>>, %arg3: memref<4x32x4xbf16, #tpu.memory_space<vmem>>, %arg4: memref<32x1xf32, #tpu.memory_space<vmem>>, %arg5: memref<32x256xbf16, #tpu.memory_space<vmem>>) attributes {dimension_semantics = [#tpu.dimension_semantics<parallel>], iteration_bounds = array<i64: 3>, scalar_prefetch = 0 : i64, scratch_operands = 0 : i64, tpu.core_type = #tpu.core_type<tc>, window_params = [{transform_indices = @transform_0, window_bounds = array<i64: 4, 256>}, {transform_indices = @transform_1, window_bounds = array<i64: 1, 4, 128>}, {pipeline_mode = #tpu.pipeline_mode<synchronous>, transform_indices = @transform_2, window_bounds = array<i64: 4, 32, 4>}, {pipeline_mode = #tpu.pipeline_mode<synchronous>, transform_indices = @transform_3, window_bounds = array<i64: 32, 1>}, {transform_indices = @transform_4, window_bounds = array<i64: 32, 256>}]} {
    %c0 = arith.constant 0 : index
    %c0_0 = arith.constant 0 : index
    %0 = vector.load %arg1[%c0, %c0_0] : memref<4x256xbf16, #tpu.memory_space<vmem>>, vector<4x256xbf16>
    %c0_1 = arith.constant 0 : index
    %c0_2 = arith.constant 0 : index
    %c0_3 = arith.constant 0 : index
    %1 = vector.load %arg2[%c0_1, %c0_2, %c0_3] : memref<1x4x128xbf16, #tpu.memory_space<vmem>>, vector<1x4x128xbf16>
    %2 = vector.shape_cast %1 : vector<1x4x128xbf16> to vector<4x128xbf16>
    %3 = tpu.concatenate %0, %2 in 1 : vector<4x256xbf16>, vector<4x128xbf16> -> vector<4x384xbf16>
    %c0_4 = arith.constant 0 : index
    %c0_5 = arith.constant 0 : index
    %c0_6 = arith.constant 0 : index
    %4 = vector.load %arg3[%c0_4, %c0_5, %c0_6] : memref<4x32x4xbf16, #tpu.memory_space<vmem>>, vector<1x32x4xbf16>
    %5 = vector.shape_cast %4 : vector<1x32x4xbf16> to vector<32x4xbf16>
    %6 = vector.extract_strided_slice %3 {offsets = [0, 0], sizes = [4, 256], strides = [1, 1]} : vector<4x384xbf16> to vector<4x256xbf16>
    %cst = arith.constant dense<0.000000e+00> : vector<32x256xf32>
    %7 = tpu.matmul %5, %6, %cst {dimension_numbers = #tpu.dot_dimension_numbers<[1], [0], [0], [1], [0, 0, 1, 1], [], []>} : vector<32x4xbf16>, vector<4x256xbf16>, vector<32x256xf32> -> vector<32x256xf32>
    %c1 = arith.constant 1 : index
    %c0_7 = arith.constant 0 : index
    %c0_8 = arith.constant 0 : index
    %8 = vector.load %arg3[%c1, %c0_7, %c0_8] : memref<4x32x4xbf16, #tpu.memory_space<vmem>>, vector<1x32x4xbf16>
    %9 = vector.shape_cast %8 : vector<1x32x4xbf16> to vector<32x4xbf16>
    %10 = vector.extract_strided_slice %3 {offsets = [0, 1], sizes = [4, 256], strides = [1, 1]} : vector<4x384xbf16> to vector<4x256xbf16>
    %cst_9 = arith.constant dense<0.000000e+00> : vector<32x256xf32>
    %11 = tpu.matmul %9, %10, %cst_9 {dimension_numbers = #tpu.dot_dimension_numbers<[1], [0], [0], [1], [0, 0, 1, 1], [], []>} : vector<32x4xbf16>, vector<4x256xbf16>, vector<32x256xf32> -> vector<32x256xf32>
    %12 = arith.addf %7, %11 : vector<32x256xf32>
    %c2 = arith.constant 2 : index
    %c0_10 = arith.constant 0 : index
    %c0_11 = arith.constant 0 : index
    %13 = vector.load %arg3[%c2, %c0_10, %c0_11] : memref<4x32x4xbf16, #tpu.memory_space<vmem>>, vector<1x32x4xbf16>
    %14 = vector.shape_cast %13 : vector<1x32x4xbf16> to vector<32x4xbf16>
    %15 = vector.extract_strided_slice %3 {offsets = [0, 17], sizes = [4, 256], strides = [1, 1]} : vector<4x384xbf16> to vector<4x256xbf16>
    %cst_12 = arith.constant dense<0.000000e+00> : vector<32x256xf32>
    %16 = tpu.matmul %14, %15, %cst_12 {dimension_numbers = #tpu.dot_dimension_numbers<[1], [0], [0], [1], [0, 0, 1, 1], [], []>} : vector<32x4xbf16>, vector<4x256xbf16>, vector<32x256xf32> -> vector<32x256xf32>
    %17 = arith.addf %12, %16 : vector<32x256xf32>
    %c3 = arith.constant 3 : index
    %c0_13 = arith.constant 0 : index
    %c0_14 = arith.constant 0 : index
    %18 = vector.load %arg3[%c3, %c0_13, %c0_14] : memref<4x32x4xbf16, #tpu.memory_space<vmem>>, vector<1x32x4xbf16>
    %19 = vector.shape_cast %18 : vector<1x32x4xbf16> to vector<32x4xbf16>
    %20 = vector.extract_strided_slice %3 {offsets = [0, 18], sizes = [4, 256], strides = [1, 1]} : vector<4x384xbf16> to vector<4x256xbf16>
    %cst_15 = arith.constant dense<0.000000e+00> : vector<32x256xf32>
    %21 = tpu.matmul %19, %20, %cst_15 {dimension_numbers = #tpu.dot_dimension_numbers<[1], [0], [0], [1], [0, 0, 1, 1], [], []>} : vector<32x4xbf16>, vector<4x256xbf16>, vector<32x256xf32> -> vector<32x256xf32>
    %22 = arith.addf %17, %21 : vector<32x256xf32>
    %c0_16 = arith.constant 0 : index
    %c0_17 = arith.constant 0 : index
    %23 = vector.load %arg4[%c0_16, %c0_17] : memref<32x1xf32, #tpu.memory_space<vmem>>, vector<32x1xf32>
    %24 = vector.broadcast %23 : vector<32x1xf32> to vector<32x256xf32>
    %25 = arith.addf %22, %24 : vector<32x256xf32>
    %cst_18 = arith.constant 0.000000e+00 : f32
    %26 = vector.broadcast %cst_18 : f32 to vector<32x256xf32>
    %27 = arith.maximumf %25, %26 : vector<32x256xf32>
    %28 = arith.truncf %27 : vector<32x256xf32> to vector<32x256xbf16>
    %c0_19 = arith.constant 0 : index
    %c0_20 = arith.constant 0 : index
    %29 = vector.load %arg5[%c0_19, %c0_20] : memref<32x256xbf16, #tpu.memory_space<vmem>>, vector<32x256xbf16>
    tpu.vector_store %arg5[%c0_19, %c0_20], %28 {strides = array<i32>} : memref<32x256xbf16, #tpu.memory_space<vmem>>, vector<32x256xbf16>,
    return
  }
  func.func @transform_0(%arg0: i32) -> (i32, i32) {
    %c0_i32 = arith.constant 0 : i32
    %c0_i32_0 = arith.constant 0 : i32
    return %c0_i32, %arg0 : i32, i32
  }
  func.func @transform_1(%arg0: i32) -> (i32, i32, i32) {
    %c0_i32 = arith.constant 0 : i32
    %c0_i32_0 = arith.constant 0 : i32
    %c0_i32_1 = arith.constant 0 : i32
    return %arg0, %c0_i32, %c0_i32_0 : i32, i32, i32
  }
  func.func @transform_2(%arg0: i32) -> (i32, i32, i32) {
    %c0_i32 = arith.constant 0 : i32
    %c0_i32_0 = arith.constant 0 : i32
    %c0_i32_1 = arith.constant 0 : i32
    %c0_i32_2 = arith.constant 0 : i32
    return %c0_i32, %c0_i32_0, %c0_i32_1 : i32, i32, i32
  }
  func.func @transform_3(%arg0: i32) -> (i32, i32) {
    %c0_i32 = arith.constant 0 : i32
    %c0_i32_0 = arith.constant 0 : i32
    %c0_i32_1 = arith.constant 0 : i32
    return %c0_i32, %c0_i32_0 : i32, i32
  }
  func.func @transform_4(%arg0: i32) -> (i32, i32) {
    %c0_i32 = arith.constant 0 : i32
    %c0_i32_0 = arith.constant 0 : i32
    return %c0_i32, %arg0 : i32, i32
  }
}

</mosaic_0001>

<llo_original>
// kernel: tile.0
$region0: #{tile.0}
  %s0 = inlined_call_operand.vmem [shape: f32[4,8], index: 0, kind: input, shape index: {}]
  %s1 = inlined_call_operand.vmem [shape: f32[32,1], index: 1, kind: output, shape index: {}]
  $region1: #{tile.0} parent=0
    #allocation0 [shape = 'u8[4096]{0}', space=vmem, size = 0x1000, scoped, tag = 'scoped mem for input reshape']
    %s3 = sshllo.u32 0, 4
    %v4 = vld [vmem:[%s0] sm:%s3]
    %5 = vst [vmem:[#allocation0] sm:%s3] %v4
    %v6 = vld [vmem:[#allocation0] sm:$0xf]
    %vm7 = vcmask 7168
    %8 = vst.msk [vmem:[%s1] ss:$8 sm:$0xf] %vm7, %v6
    %v9 = vld [vmem:[#allocation0] sm:$0xf]
    %10 = vrot.lane.b32.xlu0 %v9, 127
    %v11 = vpop.permute.xlu0 %10
    %vm12 = vcmask 7168
    %s13 = scalar_lea.vmem %s1, 1
    %14 = vst.msk [vmem:[%s13] ss:$8 sm:$0xf] %vm12, %v11
    %v15 = vld [vmem:[#allocation0] sm:$0xf]
    %16 = vrot.lane.b32.xlu0 %v15, 126
    %v17 = vpop.permute.xlu0 %16
    %vm18 = vcmask 7168
    %s19 = scalar_lea.vmem %s1, 2
    %20 = vst.msk [vmem:[%s19] ss:$8 sm:$0xf] %vm18, %v17
    %v21 = vld [vmem:[#allocation0] sm:$0xf]
    %22 = vrot.lane.b32.xlu0 %v21, 125
    %v23 = vpop.permute.xlu0 %22
    %vm24 = vcmask 7168
    %s25 = scalar_lea.vmem %s1, 3
    %26 = vst.msk [vmem:[%s25] ss:$8 sm:$0xf] %vm24, %v23
    %v27 = vld [vmem:[#allocation0] sm:$0xf]
    %28 = vrot.lane.b32.xlu0 %v27, 124
    %v29 = vpop.permute.xlu0 %28
    %vm30 = vcmask 7168
    %s31 = scalar_lea.vmem %s1, 4
    %32 = vst.msk [vmem:[%s31] ss:$8 sm:$0xf] %vm30, %v29
    %v33 = vld [vmem:[#allocation0] sm:$0xf]
    %34 = vrot.lane.b32.xlu0 %v33, 123
    %v35 = vpop.permute.xlu0 %34
    %vm36 = vcmask 7168
    %s37 = scalar_lea.vmem %s1, 5
    %38 = vst.msk [vmem:[%s37] ss:$8 sm:$0xf] %vm36, %v35
    %v39 = vld [vmem:[#allocation0] sm:$0xf]
    %40 = vrot.lane.b32.xlu0 %v39, 122
    %v41 = vpop.permute.xlu0 %40
    %vm42 = vcmask 7168
    %s43 = scalar_lea.vmem %s1, 6
    %44 = vst.msk [vmem:[%s43] ss:$8 sm:$0xf] %vm42, %v41
    %v45 = vld [vmem:[#allocation0] sm:$0xf]
    %46 = vrot.lane.b32.xlu0 %v45, 121
    %v47 = vpop.permute.xlu0 %46
    %vm48 = vcmask 7168
    %s49 = scalar_lea.vmem %s1, 7
    %50 = vst.msk [vmem:[%s49] ss:$8 sm:$0xf] %vm48, %v47

// kernel: upsampler_block.2
$region0: #{upsampler_block.2}
  #allocation0 [shape = 'u32[]', space=smem, size = 0x4, offset = 0x4, fixed_abs, tag = 'smem constant byte address 0x4 - core index']
  #allocation1 [shape = 'u32[144,128]{1,0:T(1,128)}', space=vmem, size = 0x12000, scoped, tag = 'internal scratch']
  %s0 = inlined_call_operand.vmem [shape: bf16[4,1024], index: 0, kind: input, shape index: {}]
  %s1 = inlined_call_operand.vmem [shape: bf16[3,4,128], index: 1, kind: input, shape index: {}]
  %s2 = inlined_call_operand.vmem [shape: f32[1,768], index: 2, kind: input, shape index: {}]
  %s3 = inlined_call_operand.vmem [shape: bf16[4,32,4], index: 3, kind: input, shape index: {}]
  %s4 = inlined_call_operand.vmem [shape: f32[3,32,2], index: 4, kind: output, shape index: {}]
  %s5 = sld [smem:[#allocation0]]
  $region49: #{upsampler_block.2} parent=0
    _
  %s7 = ssub.s32 1, %s5
  %s8 = scalar_select 0, %s7, %s5
  loop: start=0, step=1, limit=5
  $region2: #{upsampler_block.2} parent=0 // loop_pre_header
    _
  $region3: #{upsampler_block.2} parent=0 // loop_header
    %s10 = sphi 0, %s14
    %p11 = scmp.ge.s32.totalorder %s10, 5
    %s20 = sphi 0, %s22
    %s23 = sphi 0, %s20
    %s24 = sphi 0, %s23
    %s40 = sphi 0, %s24
    %s46 = sphi 0, %s48
    %s49 = sphi 0, %s46
    %s50 = sphi 0, %s49
    %s66 = sphi 0, %s50
    %s72 = sphi 0, %s74
    %s75 = sphi 0, %s72
    %s76 = sphi 0, %s75
    %s92 = sphi 0, %s76
    %s96 = sphi 0, %s96
    %s98 = sphi 0, %s96
    %s99 = sphi 0, %s98
    %s113 = sphi 0, %s99
    %s119 = sphi 0, %s121
    %s122 = sphi 0, %s119
    %s123 = sphi 0, %s122
    %s139 = sphi 0, %s123
  $region4: #{upsampler_block.2} parent=0 // loop_header_branch
    %13 = sbr.rel (%p11) target = $region8
  $region5: #{upsampler_block.2} parent=0 // loop_body
    %s15 = ssub.s32 %s10, 1
    %s16 = ssub.s32 %s10, 2
    %s17 = sadd.s32 %s10, 1
    %s18 = ssub.s32 %s10, %s17
    %p19 = scmp.eq.s32.totalorder %s18, 0
    %s21 = sadd.s32 %s20, 1
    %s22 = scalar_select %p19, %s20, %s21
    %p25 = pneg %p19
    %p26 = scmp.eq.s32.totalorder %s10, 2
    %p27 = por %p25, %p26
    %p28 = scmp.ne.s32.totalorder %s20, %s23
    %p29 = scmp.eq.s32.totalorder %s10, 0
    %p30 = por %p28, %p29
    %p31 = scmp.ne.s32.totalorder %s20, %s23
    %p32 = scmp.eq.s32.totalorder %s15, 2
    %p33 = por %p31, %p32
    %p34 = scmp.ne.s32.totalorder %s23, %s24
    %p35 = scmp.eq.s32.totalorder %s15, 0
    %p36 = por %p34, %p35
    %p37 = scmp.ne.s32.totalorder %s23, %s24
    %p38 = scmp.eq.s32.totalorder %s16, 2
    %p39 = por %p37, %p38
    %p41 = scmp.ne.s32.totalorder %s24, %s40
    %p42 = scmp.eq.s32.totalorder %s16, 0
    %p43 = por %p41, %p42
    %s44 = ssub.s32 %s10, %s17
    %p45 = scmp.eq.s32.totalorder %s44, 0
    %s47 = sadd.s32 %s46, 1
    %s48 = scalar_select %p45, %s46, %s47
    %p51 = pneg %p45
    %p52 = scmp.eq.s32.totalorder %s10, 2
    %p53 = por %p51, %p52
    %p54 = scmp.ne.s32.totalorder %s46, %s49
    %p55 = scmp.eq.s32.totalorder %s10, 0
    %p56 = por %p54, %p55
    %p57 = scmp.ne.s32.totalorder %s46, %s49
    %p58 = scmp.eq.s32.totalorder %s15, 2
    %p59 = por %p57, %p58
    %p60 = scmp.ne.s32.totalorder %s49, %s50
    %p61 = scmp.eq.s32.totalorder %s15, 0
    %p62 = por %p60, %p61
    %p63 = scmp.ne.s32.totalorder %s49, %s50
    %p64 = scmp.eq.s32.totalorder %s16, 2
    %p65 = por %p63, %p64
    %p67 = scmp.ne.s32.totalorder %s50, %s66
    %p68 = scmp.eq.s32.totalorder %s16, 0
    %p69 = por %p67, %p68
    %s70 = ssub.s32 %s10, %s17
    %p71 = scmp.eq.s32.totalorder %s70, 0
    %s73 = sadd.s32 %s72, 1
    %s74 = scalar_select %p71, %s72, %s73
    %p77 = pneg %p71
    %p78 = scmp.eq.s32.totalorder %s10, 2
    %p79 = por %p77, %p78
    %p80 = scmp.ne.s32.totalorder %s72, %s75
    %p81 = scmp.eq.s32.totalorder %s10, 0
    %p82 = por %p80, %p81
    %p83 = scmp.ne.s32.totalorder %s72, %s75
    %p84 = scmp.eq.s32.totalorder %s15, 2
    %p85 = por %p83, %p84
    %p86 = scmp.ne.s32.totalorder %s75, %s76
    %p87 = scmp.eq.s32.totalorder %s15, 0
    %p88 = por %p86, %p87
    %p89 = scmp.ne.s32.totalorder %s75, %s76
    %p90 = scmp.eq.s32.totalorder %s16, 2
    %p91 = por %p89, %p90
    %p93 = scmp.ne.s32.totalorder %s76, %s92
    %p94 = scmp.eq.s32.totalorder %s16, 0
    %p95 = por %p93, %p94
    %s97 = sadd.s32 %s96, 1
    %p100 = scmp.eq.s32.totalorder %s10, 2
    %p101 = scmp.ne.s32.totalorder %s96, %s98
    %p102 = scmp.eq.s32.totalorder %s10, 0
    %p103 = por %p101, %p102
    %p104 = scmp.ne.s32.totalorder %s96, %s98
    %p105 = scmp.eq.s32.totalorder %s15, 2
    %p106 = por %p104, %p105
    %p107 = scmp.ne.s32.totalorder %s98, %s99
    %p108 = scmp.eq.s32.totalorder %s15, 0
    %p109 = por %p107, %p108
    %p110 = scmp.ne.s32.totalorder %s98, %s99
    %p111 = scmp.eq.s32.totalorder %s16, 2
    %p112 = por %p110, %p111
    %p114 = scmp.ne.s32.totalorder %s99, %s113
    %p115 = scmp.eq.s32.totalorder %s16, 0
    %p116 = por %p114, %p115
    %s117 = ssub.s32 %s10, %s17
    %p118 = scmp.eq.s32.totalorder %s117, 0
    %s120 = sadd.s32 %s119, 1
    %s121 = scalar_select %p118, %s119, %s120
    %p124 = pneg %p118
    %p125 = scmp.eq.s32.totalorder %s10, 2
    %p126 = por %p124, %p125
    %p127 = scmp.ne.s32.totalorder %s119, %s122
    %p128 = scmp.eq.s32.totalorder %s10, 0
    %p129 = por %p127, %p128
    %p130 = scmp.ne.s32.totalorder %s119, %s122
    %p131 = scmp.eq.s32.totalorder %s15, 2
    %p132 = por %p130, %p131
    %p133 = scmp.ne.s32.totalorder %s122, %s123
    %p134 = scmp.eq.s32.totalorder %s15, 0
    %p135 = por %p133, %p134
    %p136 = scmp.ne.s32.totalorder %s122, %s123
    %p137 = scmp.eq.s32.totalorder %s16, 2
    %p138 = por %p136, %p137
    %p140 = scmp.ne.s32.totalorder %s123, %s139
    %p141 = scmp.eq.s32.totalorder %s16, 0
    %p142 = por %p140, %p141
    %p143 = scmp.le.s32.totalorder 1, %s10
    %p144 = scmp.lt.s32.totalorder %s10, 4
    %p145 = pnand %p143, %p144
    %p146 = pneg %p145
    // Predicated region
    $region9: #{upsampler_block.2} parent=5 // pred_check
      _
    $region10: #{upsampler_block.2} parent=5 // pred_check_branch
      %148 = sbr.rel (%p145) target = $region12
    $region11: #{upsampler_block.2} parent=5 // pred_region
      %s149 = ssub.s32 %s10, 1
      // Predicated region
      $region13: #{upsampler_block.2} parent=11 // pred_check
        %p150 = pneg %p109
      $region14: #{upsampler_block.2} parent=11 // pred_check_branch
        %152 = sbr.rel (%p150) target = $region16
      $region15: #{upsampler_block.2} parent=11 // pred_region
        _
      $region16: #{upsampler_block.2} parent=11 // pred_fallthru
        _
    $region12: #{upsampler_block.2} parent=5 // pred_fallthru
      _
    %p153 = scmp.lt.s32.totalorder %s10, 3
    // Predicated region
    $region17: #{upsampler_block.2} parent=5 // pred_check
      %p154 = pneg %p153
    $region18: #{upsampler_block.2} parent=5 // pred_check_branch
      %156 = sbr.rel (%p154) target = $region20
    $region19: #{upsampler_block.2} parent=5 // pred_region
      // Predicated region
      $region21: #{upsampler_block.2} parent=19 // pred_check
        %p157 = pneg %p30
      $region22: #{upsampler_block.2} parent=19 // pred_check_branch
        %159 = sbr.rel (%p157) target = $region24
      $region23: #{upsampler_block.2} parent=19 // pred_region
        %s160 = smul.u32 2, %s10
        %p161 = scmp.lt.s32.totalorder %s160, 7
        %s162 = scalar_select %p161, %s160, 7
        %s163 = smul.addr %s162, 2
        %s164 = scalar_lea.vmem %s0, %s163
        %s165 = smul.u32 2, %s10
      $region24: #{upsampler_block.2} parent=19 // pred_fallthru
        _
      // Predicated region
      $region25: #{upsampler_block.2} parent=19 // pred_check
        %p166 = pneg %p56
      $region26: #{upsampler_block.2} parent=19 // pred_check_branch
        %168 = sbr.rel (%p166) target = $region28
      $region27: #{upsampler_block.2} parent=19 // pred_region
        %p169 = scmp.lt.s32.totalorder %s10, 2
        %s170 = scalar_select %p169, %s10, 2
        %s171 = smul.addr %s170, 2
        %s172 = scalar_lea.vmem %s1, %s171
      $region28: #{upsampler_block.2} parent=19 // pred_fallthru
        _
      // Predicated region
      $region29: #{upsampler_block.2} parent=19 // pred_check
        %p173 = pneg %p82
      $region30: #{upsampler_block.2} parent=19 // pred_check_branch
        %175 = sbr.rel (%p173) target = $region32
      $region31: #{upsampler_block.2} parent=19 // pred_region
        %s176 = smul.u32 2, %s10
        %p177 = scmp.lt.s32.totalorder %s176, 5
        %s178 = scalar_select %p177, %s176, 5
        %s179 = scalar_lea.vmem %s2, %s178
        %s180 = smul.u32 2, %s10
      $region32: #{upsampler_block.2} parent=19 // pred_fallthru
        _
    $region20: #{upsampler_block.2} parent=5 // pred_fallthru
      _
    %p181 = scmp.le.s32.totalorder 1, %s10
    %p182 = scmp.lt.s32.totalorder %s10, 4
    %p183 = pnand %p181, %p182
    %p184 = pneg %p183
    // Predicated region
    $region33: #{upsampler_block.2} parent=5 // pred_check
      _
    $region34: #{upsampler_block.2} parent=5 // pred_check_branch
      %186 = sbr.rel (%p183) target = $region36
    $region35: #{upsampler_block.2} parent=5 // pred_region
      %s187 = ssub.s32 %s10, 1
      %s188 = smul.u32 2, %s15
      %p189 = scmp.lt.s32.totalorder %s188, 7
      %s190 = scalar_select %p189, %s188, 7
      %s191 = smul.addr %s190, 2
      %s192 = scalar_lea.vmem %s0, %s191
      %p193 = pneg %p36
      %p194 = pneg %p33
      %p195 = scmp.lt.s32.totalorder %s15, 2
      %s196 = scalar_select %p195, %s15, 2
      %s197 = smul.addr %s196, 2
      %s198 = scalar_lea.vmem %s1, %s197
      %p199 = pneg %p62
      %p200 = pneg %p59
      %s201 = smul.u32 2, %s15
      %p202 = scmp.lt.s32.totalorder %s201, 5
      %s203 = scalar_select %p202, %s201, 5
      %s204 = scalar_lea.vmem %s2, %s203
      %p205 = pneg %p88
      %p206 = pneg %p85
      %p207 = pneg %p109
      %p208 = pneg %p106
      %p209 = pneg %p135
      %p210 = pneg %p132
      %p211 = scmp.lt.s32.totalorder %s15, 2
      %s212 = scalar_select %p211, %s15, 2
      %s213 = smul.addr %s212, 4
      %s214 = smul.addr %s213, 8
      %s215 = scalar_lea.vmem %s4, %s214
      %s216 = smul.u32 2, %s15
      %p217 = scmp.lt.s32.totalorder %s216, 7
      %s218 = scalar_select %p217, %s216, 7
      %s219 = smul.addr %s218, 2
      %s220 = scalar_lea.vmem %s0, %s219
      %s221 = smul.u32 2, %s15
      %p222 = scmp.lt.s32.totalorder %s15, 2
      %s223 = scalar_select %p222, %s15, 2
      %s224 = smul.addr %s223, 2
      %s225 = scalar_lea.vmem %s1, %s224
      %s226 = smul.u32 2, %s15
      %p227 = scmp.lt.s32.totalorder %s226, 5
      %s228 = scalar_select %p227, %s226, 5
      %s229 = scalar_lea.vmem %s2, %s228
      %s230 = smul.u32 2, %s15
      %p231 = scmp.lt.s32.totalorder %s15, 2
      %s232 = scalar_select %p231, %s15, 2
      %s233 = smul.addr %s232, 4
      %s234 = smul.addr %s233, 8
      %s235 = scalar_lea.vmem %s4, %s234
      %v237 = vld [vmem:[%s220] sm:$0xf]
      %v238 = vld [vmem:[%s225] sm:$0x3]
      %v241 = vunpack.c.l.s4 1983009808
      %v242 = vunpack.c.0.s8 %v241
      %v243 = vlaneseq
      %v244 = vshrl.u32 %v243, 7
      %v245 = vsub.s32 %v242, %v244
      %v246 = vrot.slane %v237, %v245
      %v247 = vcombine.high %v246, %v246
      %v248 = vld [vmem:[%s3] sm:$0xf]
      %v249 = vld [vmem:[%s3 + $0x4] sm:$0xf]
      %v250 = vld [vmem:[%s3 + $0x8] sm:$0xf]
      %v251 = vld [vmem:[%s3 + $0xc] sm:$0xf]
      %s252 = scalar_lea.vmem %s3, 16
      %v253 = vld [vmem:[%s252] sm:$0xf]
      %v254 = vld [vmem:[%s252 + $0x4] sm:$0xf]
      %v255 = vld [vmem:[%s252 + $0x8] sm:$0xf]
      %v256 = vld [vmem:[%s252 + $0xc] sm:$0xf]
      %v261 = vunpack.c.l.b16 %v253
      %v262 = vunpack.c.l.b16 %v254
      %v263 = vunpack.c.l.b16 %v255
      %v264 = vunpack.c.l.b16 %v256
      %v265 = vpack.c.b16 %v262, %v261
      %v266 = vpack.c.b16 %v264, %v263
      %268 = vrot.lane.b32.xlu0 %v246, 127
      %v269 = vpop.permute.xlu0 %268
      %270 = vrot.lane.b32.xlu0 %v247, 127
      %v271 = vpop.permute.xlu0 %270
      %272 = vrot.lane.b32.xlu0 %v238, 127
      %v273 = vpop.permute.xlu0 %272
      %vm274 = vcmask 1039360
      %v275 = vsel %vm274, %v269, %v271
      %v276 = vsel %vm274, %v271, %v273
      %vm277 = vcmask 31744
      %v279 = vsel %vm277, %v265, 0
      %v282 = vsel %vm277, %v266, 0
      %vm284 = vcmask 1041408
      %v286 = vsel %vm284, %v275, 0
      %v289 = vsel %vm284, %v276, 0
      %291 = vmatprep.subr.bf16.mxu0 %v289
      %292 = vmatpush1.bf16.msra.mxu0 %v286
      %293 = vmatprep.subr.bf16.mxu0 0
      %294 = vmatpush1.bf16.msra.mxu0 0
      %295 = vmatprep.subr.bf16.mxu0 0
      %296 = vmatpush1.bf16.msra.mxu0 0
      %297 = vmatprep.subr.bf16.mxu0 0
      %298 = vmatpush1.bf16.msra.mxu0 0
      %299 = vmatprep.subr.bf16.mxu0 0
      %300 = vmatpush1.bf16.msra.mxu0 0
      %301 = vmatprep.subr.bf16.mxu0 0
      %302 = vmatpush1.bf16.msra.mxu0 0
      %303 = vmatprep.subr.bf16.mxu0 0
      %304 = vmatpush1.bf16.msra.mxu0 0
      %305 = vmatprep.subr.bf16.mxu0 0
      %306 = vmatpush1.bf16.msra.mxu0 0
      %307 = vmatprep.subr.bf16.mxu0 0
      %308 = vmatpush1.bf16.msra.mxu0 0
      %309 = vmatprep.subr.bf16.mxu0 0
      %310 = vmatpush1.bf16.msra.mxu0 0
      %311 = vmatprep.subr.bf16.mxu0 0
      %312 = vmatpush1.bf16.msra.mxu0 0
      %313 = vmatprep.subr.bf16.mxu0 0
      %314 = vmatpush1.bf16.msra.mxu0 0
      %315 = vmatprep.subr.bf16.mxu0 0
      %316 = vmatpush1.bf16.msra.mxu0 0
      %317 = vmatprep.subr.bf16.mxu0 0
      %318 = vmatpush1.bf16.msra.mxu0 0
      %319 = vmatprep.subr.bf16.mxu0 0
      %320 = vmatpush1.bf16.msra.mxu0 0
      %321 = vmatprep.subr.bf16.mxu0 0
      %322 = vmatpush1.bf16.msra.mxu0 0
      %323 = vmatprep.mubr.bf16.mxu0 0
      %324 = vmatmul.mubr.bf16.gmra.mrb[0].mxu0 %v279
      %v325 = vpop.f32.mrb[0].mxu0
      %v326 = vadd.f32 0.0, %v325
      %v327 = vpop.f32.mrb[0].mxu0
      %v328 = vadd.f32 0.0, %v327
      %v329 = vpop.f32.mrb[0].mxu0
      %v330 = vadd.f32 0.0, %v329
      %v331 = vpop.f32.mrb[0].mxu0
      %v332 = vadd.f32 0.0, %v331
      %333 = vmatprep.mubr.bf16.mxu0 0
      %334 = vmatmul.mubr.bf16.gmra.mrb[0].mxu0 %v282
      %v335 = vpop.f32.mrb[0].mxu0
      %v336 = vadd.f32 0.0, %v335
      %v337 = vpop.f32.mrb[0].mxu0
      %v338 = vadd.f32 0.0, %v337
      %v339 = vpop.f32.mrb[0].mxu0
      %v340 = vadd.f32 0.0, %v339
      %v341 = vpop.f32.mrb[0].mxu0
      %v342 = vadd.f32 0.0, %v341
      %343 = vdwg.mxu0
      %v348 = vunpack.c.l.b16 %v248
      %v349 = vunpack.c.l.b16 %v249
      %v350 = vunpack.c.l.b16 %v250
      %v351 = vunpack.c.l.b16 %v251
      %v352 = vpack.c.b16 %v349, %v348
      %v353 = vpack.c.b16 %v351, %v350
      %v355 = vsel %vm277, %v352, 0
      %v358 = vsel %vm277, %v353, 0
      %v361 = vsel %vm284, %v246, 0
      %v364 = vsel %vm284, %v247, 0
      %366 = vmatprep.subr.bf16.mxu0 %v364
      %367 = vmatpush1.bf16.msra.mxu0 %v361
      %368 = vmatprep.subr.bf16.mxu0 0
      %369 = vmatpush1.bf16.msra.mxu0 0
      %370 = vmatprep.subr.bf16.mxu0 0
      %371 = vmatpush1.bf16.msra.mxu0 0
      %372 = vmatprep.subr.bf16.mxu0 0
      %373 = vmatpush1.bf16.msra.mxu0 0
      %374 = vmatprep.subr.bf16.mxu0 0
      %375 = vmatpush1.bf16.msra.mxu0 0
      %376 = vmatprep.subr.bf16.mxu0 0
      %377 = vmatpush1.bf16.msra.mxu0 0
      %378 = vmatprep.subr.bf16.mxu0 0
      %379 = vmatpush1.bf16.msra.mxu0 0
      %380 = vmatprep.subr.bf16.mxu0 0
      %381 = vmatpush1.bf16.msra.mxu0 0
      %382 = vmatprep.subr.bf16.mxu0 0
      %383 = vmatpush1.bf16.msra.mxu0 0
      %384 = vmatprep.subr.bf16.mxu0 0
      %385 = vmatpush1.bf16.msra.mxu0 0
      %386 = vmatprep.subr.bf16.mxu0 0
      %387 = vmatpush1.bf16.msra.mxu0 0
      %388 = vmatprep.subr.bf16.mxu0 0
      %389 = vmatpush1.bf16.msra.mxu0 0
      %390 = vmatprep.subr.bf16.mxu0 0
      %391 = vmatpush1.bf16.msra.mxu0 0
      %392 = vmatprep.subr.bf16.mxu0 0
      %393 = vmatpush1.bf16.msra.mxu0 0
      %394 = vmatprep.subr.bf16.mxu0 0
      %395 = vmatpush1.bf16.msra.mxu0 0
      %396 = vmatprep.subr.bf16.mxu0 0
      %397 = vmatpush1.bf16.msra.mxu0 0
      %398 = vmatprep.mubr.bf16.mxu0 0
      %399 = vmatmul.mubr.bf16.gmra.mrb[0].mxu0 %v355
      %v400 = vpop.f32.mrb[0].mxu0
      %v401 = vadd.f32 %v326, %v400
      %v402 = vpop.f32.mrb[0].mxu0
      %v403 = vadd.f32 %v328, %v402
      %v404 = vpop.f32.mrb[0].mxu0
      %v405 = vadd.f32 %v330, %v404
      %v406 = vpop.f32.mrb[0].mxu0
      %v407 = vadd.f32 %v332, %v406
      %408 = vmatprep.mubr.bf16.mxu0 0
      %409 = vmatmul.mubr.bf16.gmra.mrb[0].mxu0 %v358
      %v410 = vpop.f32.mrb[0].mxu0
      %v411 = vadd.f32 %v336, %v410
      %v412 = vpop.f32.mrb[0].mxu0
      %v413 = vadd.f32 %v338, %v412
      %v414 = vpop.f32.mrb[0].mxu0
      %v415 = vadd.f32 %v340, %v414
      %v416 = vpop.f32.mrb[0].mxu0
      %v417 = vadd.f32 %v342, %v416
      %418 = vdwg.mxu0
      %s419 = scalar_lea.vmem %s3, 32
      %v420 = vld [vmem:[%s419] sm:$0xf]
      %v421 = vld [vmem:[%s419 + $0x4] sm:$0xf]
      %v422 = vld [vmem:[%s419 + $0x8] sm:$0xf]
      %v423 = vld [vmem:[%s419 + $0xc] sm:$0xf]
      %v428 = vunpack.c.l.b16 %v420
      %v429 = vunpack.c.l.b16 %v421
      %v430 = vunpack.c.l.b16 %v422
      %v431 = vunpack.c.l.b16 %v423
      %v432 = vpack.c.b16 %v429, %v428
      %v433 = vpack.c.b16 %v431, %v430
      %434 = vrot.lane.b32.xlu0 %v246, 111
      %v435 = vpop.permute.xlu0 %434
      %436 = vrot.lane.b32.xlu0 %v247, 111
      %v437 = vpop.permute.xlu0 %436
      %438 = vrot.lane.b32.xlu0 %v238, 111
      %v439 = vpop.permute.xlu0 %438
      %vm440 = vcmask 908288
      %v441 = vsel %vm440, %v435, %v437
      %v442 = vsel %vm440, %v437, %v439
      %v444 = vsel %vm277, %v432, 0
      %v447 = vsel %vm277, %v433, 0
      %v450 = vsel %vm284, %v441, 0
      %v453 = vsel %vm284, %v442, 0
      %455 = vmatprep.subr.bf16.mxu0 %v453
      %456 = vmatpush1.bf16.msra.mxu0 %v450
      %457 = vmatprep.subr.bf16.mxu0 0
      %458 = vmatpush1.bf16.msra.mxu0 0
      %459 = vmatprep.subr.bf16.mxu0 0
      %460 = vmatpush1.bf16.msra.mxu0 0
      %461 = vmatprep.subr.bf16.mxu0 0
      %462 = vmatpush1.bf16.msra.mxu0 0
      %463 = vmatprep.subr.bf16.mxu0 0
      %464 = vmatpush1.bf16.msra.mxu0 0
      %465 = vmatprep.subr.bf16.mxu0 0
      %466 = vmatpush1.bf16.msra.mxu0 0
      %467 = vmatprep.subr.bf16.mxu0 0
      %468 = vmatpush1.bf16.msra.mxu0 0
      %469 = vmatprep.subr.bf16.mxu0 0
      %470 = vmatpush1.bf16.msra.mxu0 0
      %471 = vmatprep.subr.bf16.mxu0 0
      %472 = vmatpush1.bf16.msra.mxu0 0
      %473 = vmatprep.subr.bf16.mxu0 0
      %474 = vmatpush1.bf16.msra.mxu0 0
      %475 = vmatprep.subr.bf16.mxu0 0
      %476 = vmatpush1.bf16.msra.mxu0 0
      %477 = vmatprep.subr.bf16.mxu0 0
      %478 = vmatpush1.bf16.msra.mxu0 0
      %479 = vmatprep.subr.bf16.mxu0 0
      %480 = vmatpush1.bf16.msra.mxu0 0
      %481 = vmatprep.subr.bf16.mxu0 0
      %482 = vmatpush1.bf16.msra.mxu0 0
      %483 = vmatprep.subr.bf16.mxu0 0
      %484 = vmatpush1.bf16.msra.mxu0 0
      %485 = vmatprep.subr.bf16.mxu0 0
      %486 = vmatpush1.bf16.msra.mxu0 0
      %487 = vmatprep.mubr.bf16.mxu0 0
      %488 = vmatmul.mubr.bf16.gmra.mrb[0].mxu0 %v444
      %v489 = vpop.f32.mrb[0].mxu0
      %v490 = vadd.f32 0.0, %v489
      %v491 = vpop.f32.mrb[0].mxu0
      %v492 = vadd.f32 0.0, %v491
      %v493 = vpop.f32.mrb[0].mxu0
      %v494 = vadd.f32 0.0, %v493
      %v495 = vpop.f32.mrb[0].mxu0
      %v496 = vadd.f32 0.0, %v495
      %497 = vmatprep.mubr.bf16.mxu0 0
      %498 = vmatmul.mubr.bf16.gmra.mrb[0].mxu0 %v447
      %v499 = vpop.f32.mrb[0].mxu0
      %v500 = vadd.f32 0.0, %v499
      %v501 = vpop.f32.mrb[0].mxu0
      %v502 = vadd.f32 0.0, %v501
      %v503 = vpop.f32.mrb[0].mxu0
      %v504 = vadd.f32 0.0, %v503
      %v505 = vpop.f32.mrb[0].mxu0
      %v506 = vadd.f32 0.0, %v505
      %507 = vdwg.mxu0
      %v508 = vadd.f32 %v401, %v490
      %v509 = vadd.f32 %v403, %v492
      %v510 = vadd.f32 %v405, %v494
      %v511 = vadd.f32 %v407, %v496
      %v512 = vadd.f32 %v411, %v500
      %v513 = vadd.f32 %v413, %v502
      %v514 = vadd.f32 %v415, %v504
      %v515 = vadd.f32 %v417, %v506
      %s516 = scalar_lea.vmem %s3, 48
      %v517 = vld [vmem:[%s516] sm:$0xf]
      %v518 = vld [vmem:[%s516 + $0x4] sm:$0xf]
      %v519 = vld [vmem:[%s516 + $0x8] sm:$0xf]
      %v520 = vld [vmem:[%s516 + $0xc] sm:$0xf]
      %v525 = vunpack.c.l.b16 %v517
      %v526 = vunpack.c.l.b16 %v518
      %v527 = vunpack.c.l.b16 %v519
      %v528 = vunpack.c.l.b16 %v520
      %v529 = vpack.c.b16 %v526, %v525
      %v530 = vpack.c.b16 %v528, %v527
      %531 = vrot.lane.b32.xlu0 %v246, 110
      %v532 = vpop.permute.xlu0 %531
      %533 = vrot.lane.b32.xlu0 %v247, 110
      %v534 = vpop.permute.xlu0 %533
      %535 = vrot.lane.b32.xlu0 %v238, 110
      %v536 = vpop.permute.xlu0 %535
      %vm537 = vcmask 900096
      %v538 = vsel %vm537, %v532, %v534
      %v539 = vsel %vm537, %v534, %v536
      %v541 = vsel %vm277, %v529, 0
      %v544 = vsel %vm277, %v530, 0
      %v547 = vsel %vm284, %v538, 0
      %v550 = vsel %vm284, %v539, 0
      %552 = vmatprep.subr.bf16.mxu0 %v550
      %553 = vmatpush1.bf16.msra.mxu0 %v547
      %554 = vmatprep.subr.bf16.mxu0 0
      %555 = vmatpush1.bf16.msra.mxu0 0
      %556 = vmatprep.subr.bf16.mxu0 0
      %557 = vmatpush1.bf16.msra.mxu0 0
      %558 = vmatprep.subr.bf16.mxu0 0
      %559 = vmatpush1.bf16.msra.mxu0 0
      %560 = vmatprep.subr.bf16.mxu0 0
      %561 = vmatpush1.bf16.msra.mxu0 0
      %562 = vmatprep.subr.bf16.mxu0 0
      %563 = vmatpush1.bf16.msra.mxu0 0
      %564 = vmatprep.subr.bf16.mxu0 0
      %565 = vmatpush1.bf16.msra.mxu0 0
      %566 = vmatprep.subr.bf16.mxu0 0
      %567 = vmatpush1.bf16.msra.mxu0 0
      %568 = vmatprep.subr.bf16.mxu0 0
      %569 = vmatpush1.bf16.msra.mxu0 0
      %570 = vmatprep.subr.bf16.mxu0 0
      %571 = vmatpush1.bf16.msra.mxu0 0
      %572 = vmatprep.subr.bf16.mxu0 0
      %573 = vmatpush1.bf16.msra.mxu0 0
      %574 = vmatprep.subr.bf16.mxu0 0
      %575 = vmatpush1.bf16.msra.mxu0 0
      %576 = vmatprep.subr.bf16.mxu0 0
      %577 = vmatpush1.bf16.msra.mxu0 0
      %578 = vmatprep.subr.bf16.mxu0 0
      %579 = vmatpush1.bf16.msra.mxu0 0
      %580 = vmatprep.subr.bf16.mxu0 0
      %581 = vmatpush1.bf16.msra.mxu0 0
      %582 = vmatprep.subr.bf16.mxu0 0
      %583 = vmatpush1.bf16.msra.mxu0 0
      %584 = vmatprep.mubr.bf16.mxu0 0
      %585 = vmatmul.mubr.bf16.gmra.mrb[0].mxu0 %v541
      %v586 = vpop.f32.mrb[0].mxu0
      %v587 = vadd.f32 0.0, %v586
      %v588 = vpop.f32.mrb[0].mxu0
      %v589 = vadd.f32 0.0, %v588
      %v590 = vpop.f32.mrb[0].mxu0
      %v591 = vadd.f32 0.0, %v590
      %v592 = vpop.f32.mrb[0].mxu0
      %v593 = vadd.f32 0.0, %v592
      %594 = vmatprep.mubr.bf16.mxu0 0
      %595 = vmatmul.mubr.bf16.gmra.mrb[0].mxu0 %v544
      %v596 = vpop.f32.mrb[0].mxu0
      %v597 = vadd.f32 0.0, %v596
      %v598 = vpop.f32.mrb[0].mxu0
      %v599 = vadd.f32 0.0, %v598
      %v600 = vpop.f32.mrb[0].mxu0
      %v601 = vadd.f32 0.0, %v600
      %v602 = vpop.f32.mrb[0].mxu0
      %v603 = vadd.f32 0.0, %v602
      %604 = vdwg.mxu0
      %v605 = vadd.f32 %v508, %v587
      %v606 = vadd.f32 %v509, %v589
      %v607 = vadd.f32 %v510, %v591
      %v608 = vadd.f32 %v511, %v593
      %v609 = vadd.f32 %v512, %v597
      %v610 = vadd.f32 %v513, %v599
      %v611 = vadd.f32 %v514, %v601
      %v612 = vadd.f32 %v515, %v603
      %v613 = vld [vmem:[%s229] sm:$0x3]
      %v615 = vlaneseq
      %v616 = vshrl.u32 %v615, 7
      %v617 = vsub.s32 0, %v616
      %v618 = vrot.slane %v613, %v617
      %v619 = vlaneseq
      %v620 = vshrl.u32 %v619, 7
      %v621 = vsub.s32 1, %v620
      %v622 = vrot.slane %v613, %v621
      %vm625 = vcmask 1040384
      %v626 = vsel %vm625, %v618, 0.0
      %v627 = vsel %vm625, %v622, 0.0
      %v628 = vadd.f32 %v626, %v627
      %629 = vadd.xlane.f32.xlu0 %v628
      %v630 = vpop.xlane.xlu0 %629
      %v631 = vmax.f32 %v630, 1.0
      %v632 = vmul.f32 %v605, %v618
      %v633 = vmul.f32 %v606, %v622
      %v634 = vmul.f32 %v607, %v618
      %v635 = vmul.f32 %v608, %v622
      %v636 = vmul.f32 %v609, %v618
      %v637 = vmul.f32 %v610, %v622
      %v638 = vmul.f32 %v611, %v618
      %v639 = vmul.f32 %v612, %v622
      %v640 = vadd.f32 %v632, %v633
      %641 = vadd.xlane.f32.xlu0 %v640
      %v642 = vpop.xlane.xlu0 %641
      %v643 = vadd.f32 %v634, %v635
      %644 = vadd.xlane.f32.xlu0 %v643
      %v645 = vpop.xlane.xlu0 %644
      %v646 = vadd.f32 %v636, %v637
      %647 = vadd.xlane.f32.xlu0 %v646
      %v648 = vpop.xlane.xlu0 %647
      %v649 = vadd.f32 %v638, %v639
      %650 = vadd.xlane.f32.xlu0 %v649
      %v651 = vpop.xlane.xlu0 %650
      %v652 = vlaneseq
      %v653 = vshrl.u32 %v652, 7
      %v654 = vsub.s32 0, %v653
      %v655 = vrot.slane %v631, %v654
      %v656 = vrcp.pop %v655
      %v657 = vmul.f32 %v642, %v656
      %v658 = vmul.f32 %v645, %v656
      %v659 = vmul.f32 %v648, %v656
      %v660 = vmul.f32 %v651, %v656
      %v661 = vsub.f32 %v605, %v657
      %v662 = vsub.f32 %v606, %v657
      %v663 = vsub.f32 %v607, %v658
      %v664 = vsub.f32 %v608, %v658
      %v665 = vsub.f32 %v609, %v659
      %v666 = vsub.f32 %v610, %v659
      %v667 = vsub.f32 %v611, %v660
      %v668 = vsub.f32 %v612, %v660
      %v669 = vmul.f32 %v661, %v618
      %v670 = vmul.f32 %v662, %v622
      %v671 = vmul.f32 %v663, %v618
      %v672 = vmul.f32 %v664, %v622
      %v673 = vmul.f32 %v665, %v618
      %v674 = vmul.f32 %v666, %v622
      %v675 = vmul.f32 %v667, %v618
      %v676 = vmul.f32 %v668, %v622
      %v677 = vmul.f32 %v669, %v669
      %v678 = vmul.f32 %v670, %v670
      %v679 = vmul.f32 %v671, %v671
      %v680 = vmul.f32 %v672, %v672
      %v681 = vmul.f32 %v673, %v673
      %v682 = vmul.f32 %v674, %v674
      %v683 = vmul.f32 %v675, %v675
      %v684 = vmul.f32 %v676, %v676
      %v685 = vadd.f32 %v677, %v678
      %686 = vadd.xlane.f32.xlu0 %v685
      %v687 = vpop.xlane.xlu0 %686
      %v688 = vadd.f32 %v679, %v680
      %689 = vadd.xlane.f32.xlu0 %v688
      %v690 = vpop.xlane.xlu0 %689
      %v691 = vadd.f32 %v681, %v682
      %692 = vadd.xlane.f32.xlu0 %v691
      %v693 = vpop.xlane.xlu0 %692
      %v694 = vadd.f32 %v683, %v684
      %695 = vadd.xlane.f32.xlu0 %v694
      %v696 = vpop.xlane.xlu0 %695
      %vm697 = vcmask 7168
      %v698 = vsel %vm697, %v642, %v687
      %v699 = vsel %vm697, %v645, %v690
      %v700 = vsel %vm697, %v648, %v693
      %v701 = vsel %vm697, %v651, %v696
      %vm702 = vcmask 15360
      %703 = vst.msk [vmem:[%s235] sm:$0xff] %vm702, %v698
      %704 = vst.msk [vmem:[%s235 + $0x8] sm:$0xff] %vm702, %v699
      %705 = vst.msk [vmem:[%s235 + $0x10] sm:$0xff] %vm702, %v700
      %706 = vst.msk [vmem:[%s235 + $0x18] sm:$0xff] %vm702, %v701
      %p707 = scmp.lt.s32.totalorder %s15, 2
      %s708 = scalar_select %p707, %s15, 2
      %s709 = smul.addr %s708, 4
      %s710 = smul.addr %s709, 8
      %s711 = scalar_lea.vmem %s4, %s710
      // Predicated region
      $region37: #{upsampler_block.2} parent=35 // pred_check
        %p712 = pneg %p132
      $region38: #{upsampler_block.2} parent=35 // pred_check_branch
        %714 = sbr.rel (%p712) target = $region40
      $region39: #{upsampler_block.2} parent=35 // pred_region
        _
      $region40: #{upsampler_block.2} parent=35 // pred_fallthru
        _
    $region36: #{upsampler_block.2} parent=5 // pred_fallthru
      _
    %p715 = scmp.le.s32.totalorder 2, %s10
    // Predicated region
    $region41: #{upsampler_block.2} parent=5 // pred_check
      %p716 = pneg %p715
    $region42: #{upsampler_block.2} parent=5 // pred_check_branch
      %718 = sbr.rel (%p716) target = $region44
    $region43: #{upsampler_block.2} parent=5 // pred_region
      %s719 = ssub.s32 %s10, 2
      // Predicated region
      $region45: #{upsampler_block.2} parent=43 // pred_check
        %p720 = pneg %p138
      $region46: #{upsampler_block.2} parent=43 // pred_check_branch
        %722 = sbr.rel (%p720) target = $region48
      $region47: #{upsampler_block.2} parent=43 // pred_region
        %p723 = scmp.lt.s32.totalorder %s16, 2
        %s724 = scalar_select %p723, %s16, 2
        %s725 = smul.addr %s724, 4
        %s726 = smul.addr %s725, 8
        %s727 = scalar_lea.vmem %s4, %s726
      $region48: #{upsampler_block.2} parent=43 // pred_fallthru
        _
    $region44: #{upsampler_block.2} parent=5 // pred_fallthru
      _
  $region6: #{upsampler_block.2} parent=0 // loop_footer
    %s14 = sadd.s32 1, %s10
  $region7: #{upsampler_block.2} parent=0 // loop_footer_branch
    %9 = sbr.rel target = $region3
  $region8: #{upsampler_block.2} parent=0 // loop_exit
    _

// kernel: upsampler_block.3
$region0: #{upsampler_block.3}
  #allocation0 [shape = 'u32[]', space=smem, size = 0x4, offset = 0x4, fixed_abs, tag = 'smem constant byte address 0x4 - core index']
  #allocation1 [shape = 'u32[144,128]{1,0:T(1,128)}', space=vmem, size = 0x12000, scoped, tag = 'internal scratch']
  %s0 = inlined_call_operand.vmem [shape: bf16[4,1024], index: 0, kind: input, shape index: {}]
  %s1 = inlined_call_operand.vmem [shape: bf16[3,4,128], index: 1, kind: input, shape index: {}]
  %s2 = inlined_call_operand.vmem [shape: bf16[4,32,4], index: 2, kind: input, shape index: {}]
  %s3 = inlined_call_operand.vmem [shape: f32[32,1], index: 3, kind: input, shape index: {}]
  %s4 = inlined_call_operand.vmem [shape: bf16[32,768], index: 4, kind: output, shape index: {}]
  %s5 = sld [smem:[#allocation0]]
  $region83: #{upsampler_block.3} parent=0
    _
  %s7 = ssub.s32 1, %s5
  %s8 = scalar_select 0, %s7, %s5
  $region1: #{upsampler_block.3} parent=0
    #allocation2 [shape = 'u8[32768]{0}', space=vmem, size = 0x8000, scoped, tag = 'output window, operand 0']
    loop: start=0, step=1, limit=5
    $region2: #{upsampler_block.3} parent=1 // loop_pre_header
      _
    $region3: #{upsampler_block.3} parent=1 // loop_header
      %s10 = sphi 0, %s14
      %p11 = scmp.ge.s32.totalorder %s10, 5
      %s20 = sphi 0, %s22
      %s23 = sphi 0, %s20
      %s24 = sphi 0, %s23
      %s40 = sphi 0, %s24
      %s46 = sphi 0, %s48
      %s49 = sphi 0, %s46
      %s50 = sphi 0, %s49
      %s66 = sphi 0, %s50
      %s70 = sphi 0, %s70
      %s72 = sphi 0, %s70
      %s73 = sphi 0, %s72
      %s87 = sphi 0, %s73
      %s91 = sphi 0, %s91
      %s93 = sphi 0, %s91
      %s94 = sphi 0, %s93
      %s108 = sphi 0, %s94
      %s114 = sphi 0, %s116
      %s117 = sphi 0, %s114
      %s118 = sphi 0, %s117
      %s134 = sphi 0, %s118
    $region4: #{upsampler_block.3} parent=1 // loop_header_branch
      %13 = sbr.rel (%p11) target = $region8
    $region5: #{upsampler_block.3} parent=1 // loop_body
      %s15 = ssub.s32 %s10, 1
      %s16 = ssub.s32 %s10, 2
      %s17 = sadd.s32 %s10, 1
      %s18 = ssub.s32 %s10, %s17
      %p19 = scmp.eq.s32.totalorder %s18, 0
      %s21 = sadd.s32 %s20, 1
      %s22 = scalar_select %p19, %s20, %s21
      %p25 = pneg %p19
      %p26 = scmp.eq.s32.totalorder %s10, 2
      %p27 = por %p25, %p26
      %p28 = scmp.ne.s32.totalorder %s20, %s23
      %p29 = scmp.eq.s32.totalorder %s10, 0
      %p30 = por %p28, %p29
      %p31 = scmp.ne.s32.totalorder %s20, %s23
      %p32 = scmp.eq.s32.totalorder %s15, 2
      %p33 = por %p31, %p32
      %p34 = scmp.ne.s32.totalorder %s23, %s24
      %p35 = scmp.eq.s32.totalorder %s15, 0
      %p36 = por %p34, %p35
      %p37 = scmp.ne.s32.totalorder %s23, %s24
      %p38 = scmp.eq.s32.totalorder %s16, 2
      %p39 = por %p37, %p38
      %p41 = scmp.ne.s32.totalorder %s24, %s40
      %p42 = scmp.eq.s32.totalorder %s16, 0
      %p43 = por %p41, %p42
      %s44 = ssub.s32 %s10, %s17
      %p45 = scmp.eq.s32.totalorder %s44, 0
      %s47 = sadd.s32 %s46, 1
      %s48 = scalar_select %p45, %s46, %s47
      %p51 = pneg %p45
      %p52 = scmp.eq.s32.totalorder %s10, 2
      %p53 = por %p51, %p52
      %p54 = scmp.ne.s32.totalorder %s46, %s49
      %p55 = scmp.eq.s32.totalorder %s10, 0
      %p56 = por %p54, %p55
      %p57 = scmp.ne.s32.totalorder %s46, %s49
      %p58 = scmp.eq.s32.totalorder %s15, 2
      %p59 = por %p57, %p58
      %p60 = scmp.ne.s32.totalorder %s49, %s50
      %p61 = scmp.eq.s32.totalorder %s15, 0
      %p62 = por %p60, %p61
      %p63 = scmp.ne.s32.totalorder %s49, %s50
      %p64 = scmp.eq.s32.totalorder %s16, 2
      %p65 = por %p63, %p64
      %p67 = scmp.ne.s32.totalorder %s50, %s66
      %p68 = scmp.eq.s32.totalorder %s16, 0
      %p69 = por %p67, %p68
      %s71 = sadd.s32 %s70, 1
      %p74 = scmp.eq.s32.totalorder %s10, 2
      %p75 = scmp.ne.s32.totalorder %s70, %s72
      %p76 = scmp.eq.s32.totalorder %s10, 0
      %p77 = por %p75, %p76
      %p78 = scmp.ne.s32.totalorder %s70, %s72
      %p79 = scmp.eq.s32.totalorder %s15, 2
      %p80 = por %p78, %p79
      %p81 = scmp.ne.s32.totalorder %s72, %s73
      %p82 = scmp.eq.s32.totalorder %s15, 0
      %p83 = por %p81, %p82
      %p84 = scmp.ne.s32.totalorder %s72, %s73
      %p85 = scmp.eq.s32.totalorder %s16, 2
      %p86 = por %p84, %p85
      %p88 = scmp.ne.s32.totalorder %s73, %s87
      %p89 = scmp.eq.s32.totalorder %s16, 0
      %p90 = por %p88, %p89
      %s92 = sadd.s32 %s91, 1
      %p95 = scmp.eq.s32.totalorder %s10, 2
      %p96 = scmp.ne.s32.totalorder %s91, %s93
      %p97 = scmp.eq.s32.totalorder %s10, 0
      %p98 = por %p96, %p97
      %p99 = scmp.ne.s32.totalorder %s91, %s93
      %p100 = scmp.eq.s32.totalorder %s15, 2
      %p101 = por %p99, %p100
      %p102 = scmp.ne.s32.totalorder %s93, %s94
      %p103 = scmp.eq.s32.totalorder %s15, 0
      %p104 = por %p102, %p103
      %p105 = scmp.ne.s32.totalorder %s93, %s94
      %p106 = scmp.eq.s32.totalorder %s16, 2
      %p107 = por %p105, %p106
      %p109 = scmp.ne.s32.totalorder %s94, %s108
      %p110 = scmp.eq.s32.totalorder %s16, 0
      %p111 = por %p109, %p110
      %s112 = ssub.s32 %s10, %s17
      %p113 = scmp.eq.s32.totalorder %s112, 0
      %s115 = sadd.s32 %s114, 1
      %s116 = scalar_select %p113, %s114, %s115
      %p119 = pneg %p113
      %p120 = scmp.eq.s32.totalorder %s10, 2
      %p121 = por %p119, %p120
      %p122 = scmp.ne.s32.totalorder %s114, %s117
      %p123 = scmp.eq.s32.totalorder %s10, 0
      %p124 = por %p122, %p123
      %p125 = scmp.ne.s32.totalorder %s114, %s117
      %p126 = scmp.eq.s32.totalorder %s15, 2
      %p127 = por %p125, %p126
      %p128 = scmp.ne.s32.totalorder %s117, %s118
      %p129 = scmp.eq.s32.totalorder %s15, 0
      %p130 = por %p128, %p129
      %p131 = scmp.ne.s32.totalorder %s117, %s118
      %p132 = scmp.eq.s32.totalorder %s16, 2
      %p133 = por %p131, %p132
      %p135 = scmp.ne.s32.totalorder %s118, %s134
      %p136 = scmp.eq.s32.totalorder %s16, 0
      %p137 = por %p135, %p136
      %p138 = scmp.le.s32.totalorder 1, %s10
      %p139 = scmp.lt.s32.totalorder %s10, 4
      %p140 = pnand %p138, %p139
      %p141 = pneg %p140
      // Predicated region
      $region9: #{upsampler_block.3} parent=5 // pred_check
        _
      $region10: #{upsampler_block.3} parent=5 // pred_check_branch
        %143 = sbr.rel (%p140) target = $region12
      $region11: #{upsampler_block.3} parent=5 // pred_region
        %s144 = ssub.s32 %s10, 1
        // Predicated region
        $region13: #{upsampler_block.3} parent=11 // pred_check
          %p145 = pneg %p83
        $region14: #{upsampler_block.3} parent=11 // pred_check_branch
          %147 = sbr.rel (%p145) target = $region16
        $region15: #{upsampler_block.3} parent=11 // pred_region
          _
        $region16: #{upsampler_block.3} parent=11 // pred_fallthru
          _
        // Predicated region
        $region17: #{upsampler_block.3} parent=11 // pred_check
          %p148 = pneg %p104
        $region18: #{upsampler_block.3} parent=11 // pred_check_branch
          %150 = sbr.rel (%p148) target = $region20
        $region19: #{upsampler_block.3} parent=11 // pred_region
          _
        $region20: #{upsampler_block.3} parent=11 // pred_fallthru
          _
      $region12: #{upsampler_block.3} parent=5 // pred_fallthru
        _
      %p151 = scmp.lt.s32.totalorder %s10, 3
      // Predicated region
      $region21: #{upsampler_block.3} parent=5 // pred_check
        %p152 = pneg %p151
      $region22: #{upsampler_block.3} parent=5 // pred_check_branch
        %154 = sbr.rel (%p152) target = $region24
      $region23: #{upsampler_block.3} parent=5 // pred_region
        // Predicated region
        $region25: #{upsampler_block.3} parent=23 // pred_check
          %p155 = pneg %p30
        $region26: #{upsampler_block.3} parent=23 // pred_check_branch
          %157 = sbr.rel (%p155) target = $region28
        $region27: #{upsampler_block.3} parent=23 // pred_region
          %s158 = smul.u32 2, %s10
          %p159 = scmp.lt.s32.totalorder %s158, 7
          %s160 = scalar_select %p159, %s158, 7
          %s161 = smul.addr %s160, 2
          %s162 = scalar_lea.vmem %s0, %s161
          %s163 = smul.u32 2, %s10
        $region28: #{upsampler_block.3} parent=23 // pred_fallthru
          _
        // Predicated region
        $region29: #{upsampler_block.3} parent=23 // pred_check
          %p164 = pneg %p56
        $region30: #{upsampler_block.3} parent=23 // pred_check_branch
          %166 = sbr.rel (%p164) target = $region32
        $region31: #{upsampler_block.3} parent=23 // pred_region
          %p167 = scmp.lt.s32.totalorder %s10, 2
          %s168 = scalar_select %p167, %s10, 2
          %s169 = smul.addr %s168, 2
          %s170 = scalar_lea.vmem %s1, %s169
        $region32: #{upsampler_block.3} parent=23 // pred_fallthru
          _
      $region24: #{upsampler_block.3} parent=5 // pred_fallthru
        _
      %p171 = scmp.le.s32.totalorder 1, %s10
      %p172 = scmp.lt.s32.totalorder %s10, 4
      %p173 = pnand %p171, %p172
      %p174 = pneg %p173
      // Predicated region
      $region33: #{upsampler_block.3} parent=5 // pred_check
        _
      $region34: #{upsampler_block.3} parent=5 // pred_check_branch
        %176 = sbr.rel (%p173) target = $region36
      $region35: #{upsampler_block.3} parent=5 // pred_region
        %s177 = ssub.s32 %s10, 1
        %s178 = smul.u32 2, %s15
        %p179 = scmp.lt.s32.totalorder %s178, 7
        %s180 = scalar_select %p179, %s178, 7
        %s181 = smul.addr %s180, 2
        %s182 = scalar_lea.vmem %s0, %s181
        %p183 = pneg %p36
        %p184 = pneg %p33
        %p185 = scmp.lt.s32.totalorder %s15, 2
        %s186 = scalar_select %p185, %s15, 2
        %s187 = smul.addr %s186, 2
        %s188 = scalar_lea.vmem %s1, %s187
        %p189 = pneg %p62
        %p190 = pneg %p59
        %p191 = pneg %p83
        %p192 = pneg %p80
        %p193 = pneg %p104
        %p194 = pneg %p101
        %p195 = pneg %p130
        %p196 = pneg %p127
        %s197 = sand.u32 %s117, 1
        %s198 = sand.u32 %s117, 1
        %s199 = smul.addr %s198, 32
        %s200 = scalar_lea.vmem [#allocation2], %s199
        %s201 = smul.u32 2, %s15
        %p202 = scmp.lt.s32.totalorder %s201, 7
        %s203 = scalar_select %p202, %s201, 7
        %s204 = smul.addr %s203, 2
        %s205 = scalar_lea.vmem %s0, %s204
        %s206 = smul.u32 2, %s15
        %p207 = scmp.lt.s32.totalorder %s15, 2
        %s208 = scalar_select %p207, %s15, 2
        %s209 = smul.addr %s208, 2
        %s210 = scalar_lea.vmem %s1, %s209
        %s211 = smul.u32 2, %s15
        %v213 = vld [vmem:[%s205] sm:$0xf]
        %v214 = vld [vmem:[%s210] sm:$0x3]
        %v217 = vunpack.c.l.s4 1983009808
        %v218 = vunpack.c.0.s8 %v217
        %v219 = vlaneseq
        %v220 = vshrl.u32 %v219, 7
        %v221 = vsub.s32 %v218, %v220
        %v222 = vrot.slane %v213, %v221
        %v223 = vcombine.high %v222, %v222
        %v224 = vld [vmem:[%s2] sm:$0xf]
        %v225 = vld [vmem:[%s2 + $0x4] sm:$0xf]
        %v226 = vld [vmem:[%s2 + $0x8] sm:$0xf]
        %v227 = vld [vmem:[%s2 + $0xc] sm:$0xf]
        %s228 = scalar_lea.vmem %s2, 16
        %v229 = vld [vmem:[%s228] sm:$0xf]
        %v230 = vld [vmem:[%s228 + $0x4] sm:$0xf]
        %v231 = vld [vmem:[%s228 + $0x8] sm:$0xf]
        %v232 = vld [vmem:[%s228 + $0xc] sm:$0xf]
        %v237 = vunpack.c.l.b16 %v229
        %v238 = vunpack.c.l.b16 %v230
        %v239 = vunpack.c.l.b16 %v231
        %v240 = vunpack.c.l.b16 %v232
        %v241 = vpack.c.b16 %v238, %v237
        %v242 = vpack.c.b16 %v240, %v239
        %244 = vrot.lane.b32.xlu0 %v222, 127
        %v245 = vpop.permute.xlu0 %244
        %246 = vrot.lane.b32.xlu0 %v223, 127
        %v247 = vpop.permute.xlu0 %246
        %248 = vrot.lane.b32.xlu0 %v214, 127
        %v249 = vpop.permute.xlu0 %248
        %vm250 = vcmask 1039360
        %v251 = vsel %vm250, %v245, %v247
        %v252 = vsel %vm250, %v247, %v249
        %vm253 = vcmask 31744
        %v255 = vsel %vm253, %v241, 0
        %v258 = vsel %vm253, %v242, 0
        %vm260 = vcmask 1041408
        %v262 = vsel %vm260, %v251, 0
        %v265 = vsel %vm260, %v252, 0
        %267 = vmatprep.subr.bf16.mxu0 %v265
        %268 = vmatpush1.bf16.msra.mxu0 %v262
        %269 = vmatprep.subr.bf16.mxu0 0
        %270 = vmatpush1.bf16.msra.mxu0 0
        %271 = vmatprep.subr.bf16.mxu0 0
        %272 = vmatpush1.bf16.msra.mxu0 0
        %273 = vmatprep.subr.bf16.mxu0 0
        %274 = vmatpush1.bf16.msra.mxu0 0
        %275 = vmatprep.subr.bf16.mxu0 0
        %276 = vmatpush1.bf16.msra.mxu0 0
        %277 = vmatprep.subr.bf16.mxu0 0
        %278 = vmatpush1.bf16.msra.mxu0 0
        %279 = vmatprep.subr.bf16.mxu0 0
        %280 = vmatpush1.bf16.msra.mxu0 0
        %281 = vmatprep.subr.bf16.mxu0 0
        %282 = vmatpush1.bf16.msra.mxu0 0
        %283 = vmatprep.subr.bf16.mxu0 0
        %284 = vmatpush1.bf16.msra.mxu0 0
        %285 = vmatprep.subr.bf16.mxu0 0
        %286 = vmatpush1.bf16.msra.mxu0 0
        %287 = vmatprep.subr.bf16.mxu0 0
        %288 = vmatpush1.bf16.msra.mxu0 0
        %289 = vmatprep.subr.bf16.mxu0 0
        %290 = vmatpush1.bf16.msra.mxu0 0
        %291 = vmatprep.subr.bf16.mxu0 0
        %292 = vmatpush1.bf16.msra.mxu0 0
        %293 = vmatprep.subr.bf16.mxu0 0
        %294 = vmatpush1.bf16.msra.mxu0 0
        %295 = vmatprep.subr.bf16.mxu0 0
        %296 = vmatpush1.bf16.msra.mxu0 0
        %297 = vmatprep.subr.bf16.mxu0 0
        %298 = vmatpush1.bf16.msra.mxu0 0
        %299 = vmatprep.mubr.bf16.mxu0 0
        %300 = vmatmul.mubr.bf16.gmra.mrb[0].mxu0 %v255
        %v301 = vpop.f32.mrb[0].mxu0
        %v302 = vadd.f32 0.0, %v301
        %v303 = vpop.f32.mrb[0].mxu0
        %v304 = vadd.f32 0.0, %v303
        %v305 = vpop.f32.mrb[0].mxu0
        %v306 = vadd.f32 0.0, %v305
        %v307 = vpop.f32.mrb[0].mxu0
        %v308 = vadd.f32 0.0, %v307
        %309 = vmatprep.mubr.bf16.mxu0 0
        %310 = vmatmul.mubr.bf16.gmra.mrb[0].mxu0 %v258
        %v311 = vpop.f32.mrb[0].mxu0
        %v312 = vadd.f32 0.0, %v311
        %v313 = vpop.f32.mrb[0].mxu0
        %v314 = vadd.f32 0.0, %v313
        %v315 = vpop.f32.mrb[0].mxu0
        %v316 = vadd.f32 0.0, %v315
        %v317 = vpop.f32.mrb[0].mxu0
        %v318 = vadd.f32 0.0, %v317
        %319 = vdwg.mxu0
        %v324 = vunpack.c.l.b16 %v224
        %v325 = vunpack.c.l.b16 %v225
        %v326 = vunpack.c.l.b16 %v226
        %v327 = vunpack.c.l.b16 %v227
        %v328 = vpack.c.b16 %v325, %v324
        %v329 = vpack.c.b16 %v327, %v326
        %v331 = vsel %vm253, %v328, 0
        %v334 = vsel %vm253, %v329, 0
        %v337 = vsel %vm260, %v222, 0
        %v340 = vsel %vm260, %v223, 0
        %342 = vmatprep.subr.bf16.mxu0 %v340
        %343 = vmatpush1.bf16.msra.mxu0 %v337
        %344 = vmatprep.subr.bf16.mxu0 0
        %345 = vmatpush1.bf16.msra.mxu0 0
        %346 = vmatprep.subr.bf16.mxu0 0
        %347 = vmatpush1.bf16.msra.mxu0 0
        %348 = vmatprep.subr.bf16.mxu0 0
        %349 = vmatpush1.bf16.msra.mxu0 0
        %350 = vmatprep.subr.bf16.mxu0 0
        %351 = vmatpush1.bf16.msra.mxu0 0
        %352 = vmatprep.subr.bf16.mxu0 0
        %353 = vmatpush1.bf16.msra.mxu0 0
        %354 = vmatprep.subr.bf16.mxu0 0
        %355 = vmatpush1.bf16.msra.mxu0 0
        %356 = vmatprep.subr.bf16.mxu0 0
        %357 = vmatpush1.bf16.msra.mxu0 0
        %358 = vmatprep.subr.bf16.mxu0 0
        %359 = vmatpush1.bf16.msra.mxu0 0
        %360 = vmatprep.subr.bf16.mxu0 0
        %361 = vmatpush1.bf16.msra.mxu0 0
        %362 = vmatprep.subr.bf16.mxu0 0
        %363 = vmatpush1.bf16.msra.mxu0 0
        %364 = vmatprep.subr.bf16.mxu0 0
        %365 = vmatpush1.bf16.msra.mxu0 0
        %366 = vmatprep.subr.bf16.mxu0 0
        %367 = vmatpush1.bf16.msra.mxu0 0
        %368 = vmatprep.subr.bf16.mxu0 0
        %369 = vmatpush1.bf16.msra.mxu0 0
        %370 = vmatprep.subr.bf16.mxu0 0
        %371 = vmatpush1.bf16.msra.mxu0 0
        %372 = vmatprep.subr.bf16.mxu0 0
        %373 = vmatpush1.bf16.msra.mxu0 0
        %374 = vmatprep.mubr.bf16.mxu0 0
        %375 = vmatmul.mubr.bf16.gmra.mrb[0].mxu0 %v331
        %v376 = vpop.f32.mrb[0].mxu0
        %v377 = vadd.f32 %v302, %v376
        %v378 = vpop.f32.mrb[0].mxu0
        %v379 = vadd.f32 %v304, %v378
        %v380 = vpop.f32.mrb[0].mxu0
        %v381 = vadd.f32 %v306, %v380
        %v382 = vpop.f32.mrb[0].mxu0
        %v383 = vadd.f32 %v308, %v382
        %384 = vmatprep.mubr.bf16.mxu0 0
        %385 = vmatmul.mubr.bf16.gmra.mrb[0].mxu0 %v334
        %v386 = vpop.f32.mrb[0].mxu0
        %v387 = vadd.f32 %v312, %v386
        %v388 = vpop.f32.mrb[0].mxu0
        %v389 = vadd.f32 %v314, %v388
        %v390 = vpop.f32.mrb[0].mxu0
        %v391 = vadd.f32 %v316, %v390
        %v392 = vpop.f32.mrb[0].mxu0
        %v393 = vadd.f32 %v318, %v392
        %394 = vdwg.mxu0
        %s395 = scalar_lea.vmem %s2, 32
        %v396 = vld [vmem:[%s395] sm:$0xf]
        %v397 = vld [vmem:[%s395 + $0x4] sm:$0xf]
        %v398 = vld [vmem:[%s395 + $0x8] sm:$0xf]
        %v399 = vld [vmem:[%s395 + $0xc] sm:$0xf]
        %v404 = vunpack.c.l.b16 %v396
        %v405 = vunpack.c.l.b16 %v397
        %v406 = vunpack.c.l.b16 %v398
        %v407 = vunpack.c.l.b16 %v399
        %v408 = vpack.c.b16 %v405, %v404
        %v409 = vpack.c.b16 %v407, %v406
        %410 = vrot.lane.b32.xlu0 %v222, 111
        %v411 = vpop.permute.xlu0 %410
        %412 = vrot.lane.b32.xlu0 %v223, 111
        %v413 = vpop.permute.xlu0 %412
        %414 = vrot.lane.b32.xlu0 %v214, 111
        %v415 = vpop.permute.xlu0 %414
        %vm416 = vcmask 908288
        %v417 = vsel %vm416, %v411, %v413
        %v418 = vsel %vm416, %v413, %v415
        %v420 = vsel %vm253, %v408, 0
        %v423 = vsel %vm253, %v409, 0
        %v426 = vsel %vm260, %v417, 0
        %v429 = vsel %vm260, %v418, 0
        %431 = vmatprep.subr.bf16.mxu0 %v429
        %432 = vmatpush1.bf16.msra.mxu0 %v426
        %433 = vmatprep.subr.bf16.mxu0 0
        %434 = vmatpush1.bf16.msra.mxu0 0
        %435 = vmatprep.subr.bf16.mxu0 0
        %436 = vmatpush1.bf16.msra.mxu0 0
        %437 = vmatprep.subr.bf16.mxu0 0
        %438 = vmatpush1.bf16.msra.mxu0 0
        %439 = vmatprep.subr.bf16.mxu0 0
        %440 = vmatpush1.bf16.msra.mxu0 0
        %441 = vmatprep.subr.bf16.mxu0 0
        %442 = vmatpush1.bf16.msra.mxu0 0
        %443 = vmatprep.subr.bf16.mxu0 0
        %444 = vmatpush1.bf16.msra.mxu0 0
        %445 = vmatprep.subr.bf16.mxu0 0
        %446 = vmatpush1.bf16.msra.mxu0 0
        %447 = vmatprep.subr.bf16.mxu0 0
        %448 = vmatpush1.bf16.msra.mxu0 0
        %449 = vmatprep.subr.bf16.mxu0 0
        %450 = vmatpush1.bf16.msra.mxu0 0
        %451 = vmatprep.subr.bf16.mxu0 0
        %452 = vmatpush1.bf16.msra.mxu0 0
        %453 = vmatprep.subr.bf16.mxu0 0
        %454 = vmatpush1.bf16.msra.mxu0 0
        %455 = vmatprep.subr.bf16.mxu0 0
        %456 = vmatpush1.bf16.msra.mxu0 0
        %457 = vmatprep.subr.bf16.mxu0 0
        %458 = vmatpush1.bf16.msra.mxu0 0
        %459 = vmatprep.subr.bf16.mxu0 0
        %460 = vmatpush1.bf16.msra.mxu0 0
        %461 = vmatprep.subr.bf16.mxu0 0
        %462 = vmatpush1.bf16.msra.mxu0 0
        %463 = vmatprep.mubr.bf16.mxu0 0
        %464 = vmatmul.mubr.bf16.gmra.mrb[0].mxu0 %v420
        %v465 = vpop.f32.mrb[0].mxu0
        %v466 = vadd.f32 0.0, %v465
        %v467 = vpop.f32.mrb[0].mxu0
        %v468 = vadd.f32 0.0, %v467
        %v469 = vpop.f32.mrb[0].mxu0
        %v470 = vadd.f32 0.0, %v469
        %v471 = vpop.f32.mrb[0].mxu0
        %v472 = vadd.f32 0.0, %v471
        %473 = vmatprep.mubr.bf16.mxu0 0
        %474 = vmatmul.mubr.bf16.gmra.mrb[0].mxu0 %v423
        %v475 = vpop.f32.mrb[0].mxu0
        %v476 = vadd.f32 0.0, %v475
        %v477 = vpop.f32.mrb[0].mxu0
        %v478 = vadd.f32 0.0, %v477
        %v479 = vpop.f32.mrb[0].mxu0
        %v480 = vadd.f32 0.0, %v479
        %v481 = vpop.f32.mrb[0].mxu0
        %v482 = vadd.f32 0.0, %v481
        %483 = vdwg.mxu0
        %v484 = vadd.f32 %v377, %v466
        %v485 = vadd.f32 %v379, %v468
        %v486 = vadd.f32 %v381, %v470
        %v487 = vadd.f32 %v383, %v472
        %v488 = vadd.f32 %v387, %v476
        %v489 = vadd.f32 %v389, %v478
        %v490 = vadd.f32 %v391, %v480
        %v491 = vadd.f32 %v393, %v482
        %s492 = scalar_lea.vmem %s2, 48
        %v493 = vld [vmem:[%s492] sm:$0xf]
        %v494 = vld [vmem:[%s492 + $0x4] sm:$0xf]
        %v495 = vld [vmem:[%s492 + $0x8] sm:$0xf]
        %v496 = vld [vmem:[%s492 + $0xc] sm:$0xf]
        %v501 = vunpack.c.l.b16 %v493
        %v502 = vunpack.c.l.b16 %v494
        %v503 = vunpack.c.l.b16 %v495
        %v504 = vunpack.c.l.b16 %v496
        %v505 = vpack.c.b16 %v502, %v501
        %v506 = vpack.c.b16 %v504, %v503
        %507 = vrot.lane.b32.xlu0 %v222, 110
        %v508 = vpop.permute.xlu0 %507
        %509 = vrot.lane.b32.xlu0 %v223, 110
        %v510 = vpop.permute.xlu0 %509
        %511 = vrot.lane.b32.xlu0 %v214, 110
        %v512 = vpop.permute.xlu0 %511
        %vm513 = vcmask 900096
        %v514 = vsel %vm513, %v508, %v510
        %v515 = vsel %vm513, %v510, %v512
        %v517 = vsel %vm253, %v505, 0
        %v520 = vsel %vm253, %v506, 0
        %v523 = vsel %vm260, %v514, 0
        %v526 = vsel %vm260, %v515, 0
        %528 = vmatprep.subr.bf16.mxu0 %v526
        %529 = vmatpush1.bf16.msra.mxu0 %v523
        %530 = vmatprep.subr.bf16.mxu0 0
        %531 = vmatpush1.bf16.msra.mxu0 0
        %532 = vmatprep.subr.bf16.mxu0 0
        %533 = vmatpush1.bf16.msra.mxu0 0
        %534 = vmatprep.subr.bf16.mxu0 0
        %535 = vmatpush1.bf16.msra.mxu0 0
        %536 = vmatprep.subr.bf16.mxu0 0
        %537 = vmatpush1.bf16.msra.mxu0 0
        %538 = vmatprep.subr.bf16.mxu0 0
        %539 = vmatpush1.bf16.msra.mxu0 0
        %540 = vmatprep.subr.bf16.mxu0 0
        %541 = vmatpush1.bf16.msra.mxu0 0
        %542 = vmatprep.subr.bf16.mxu0 0
        %543 = vmatpush1.bf16.msra.mxu0 0
        %544 = vmatprep.subr.bf16.mxu0 0
        %545 = vmatpush1.bf16.msra.mxu0 0
        %546 = vmatprep.subr.bf16.mxu0 0
        %547 = vmatpush1.bf16.msra.mxu0 0
        %548 = vmatprep.subr.bf16.mxu0 0
        %549 = vmatpush1.bf16.msra.mxu0 0
        %550 = vmatprep.subr.bf16.mxu0 0
        %551 = vmatpush1.bf16.msra.mxu0 0
        %552 = vmatprep.subr.bf16.mxu0 0
        %553 = vmatpush1.bf16.msra.mxu0 0
        %554 = vmatprep.subr.bf16.mxu0 0
        %555 = vmatpush1.bf16.msra.mxu0 0
        %556 = vmatprep.subr.bf16.mxu0 0
        %557 = vmatpush1.bf16.msra.mxu0 0
        %558 = vmatprep.subr.bf16.mxu0 0
        %559 = vmatpush1.bf16.msra.mxu0 0
        %560 = vmatprep.mubr.bf16.mxu0 0
        %561 = vmatmul.mubr.bf16.gmra.mrb[0].mxu0 %v517
        %v562 = vpop.f32.mrb[0].mxu0
        %v563 = vadd.f32 0.0, %v562
        %v564 = vpop.f32.mrb[0].mxu0
        %v565 = vadd.f32 0.0, %v564
        %v566 = vpop.f32.mrb[0].mxu0
        %v567 = vadd.f32 0.0, %v566
        %v568 = vpop.f32.mrb[0].mxu0
        %v569 = vadd.f32 0.0, %v568
        %570 = vmatprep.mubr.bf16.mxu0 0
        %571 = vmatmul.mubr.bf16.gmra.mrb[0].mxu0 %v520
        %v572 = vpop.f32.mrb[0].mxu0
        %v573 = vadd.f32 0.0, %v572
        %v574 = vpop.f32.mrb[0].mxu0
        %v575 = vadd.f32 0.0, %v574
        %v576 = vpop.f32.mrb[0].mxu0
        %v577 = vadd.f32 0.0, %v576
        %v578 = vpop.f32.mrb[0].mxu0
        %v579 = vadd.f32 0.0, %v578
        %580 = vdwg.mxu0
        %v581 = vadd.f32 %v484, %v563
        %v582 = vadd.f32 %v485, %v565
        %v583 = vadd.f32 %v486, %v567
        %v584 = vadd.f32 %v487, %v569
        %v585 = vadd.f32 %v488, %v573
        %v586 = vadd.f32 %v489, %v575
        %v587 = vadd.f32 %v490, %v577
        %v588 = vadd.f32 %v491, %v579
        %v589 = vld [vmem:[%s3] sm:$0xff]
        %v590 = vld [vmem:[%s3 + $0x8] sm:$0xff]
        %v591 = vld [vmem:[%s3 + $0x10] sm:$0xff]
        %v592 = vld [vmem:[%s3 + $0x18] sm:$0xff]
        %594 = vset.pattern.permute.xlu0 0
        %595 = vperm.xlu0 %594, %v589
        %v596 = vpop.permute.xlu0 %595
        %599 = vset.pattern.permute.xlu0 0
        %600 = vperm.xlu0 %599, %v590
        %v601 = vpop.permute.xlu0 %600
        %604 = vset.pattern.permute.xlu0 0
        %605 = vperm.xlu0 %604, %v591
        %v606 = vpop.permute.xlu0 %605
        %609 = vset.pattern.permute.xlu0 0
        %610 = vperm.xlu0 %609, %v592
        %v611 = vpop.permute.xlu0 %610
        %v613 = vadd.f32 %v581, %v596
        %v614 = vadd.f32 %v582, %v596
        %v615 = vadd.f32 %v583, %v601
        %v616 = vadd.f32 %v584, %v601
        %v617 = vadd.f32 %v585, %v606
        %v618 = vadd.f32 %v586, %v606
        %v619 = vadd.f32 %v587, %v611
        %v620 = vadd.f32 %v588, %v611
        %v621 = vmax.f32 %v613, 0.0
        %v622 = vmax.f32 %v614, 0.0
        %v623 = vmax.f32 %v615, 0.0
        %v624 = vmax.f32 %v616, 0.0
        %v625 = vmax.f32 %v617, 0.0
        %v626 = vmax.f32 %v618, 0.0
        %v627 = vmax.f32 %v619, 0.0
        %v628 = vmax.f32 %v620, 0.0
        %v629 = vpack.c.bf16 %v623, %v621
        %v630 = vpack.c.bf16 %v624, %v622
        %v631 = vpack.c.bf16 %v627, %v625
        %v632 = vpack.c.bf16 %v628, %v626
        %v637 = vunpack.c.l.b16 %v629
        %v638 = vunpack.c.l.b16 %v630
        %v639 = vunpack.c.h.b16 %v629
        %v640 = vunpack.c.h.b16 %v630
        %v641 = vunpack.c.l.b16 %v631
        %v642 = vunpack.c.l.b16 %v632
        %v643 = vunpack.c.h.b16 %v631
        %v644 = vunpack.c.h.b16 %v632
        %v645 = vpack.c.b16 %v638, %v637
        %v646 = vpack.c.b16 %v640, %v639
        %v647 = vpack.c.b16 %v642, %v641
        %v648 = vpack.c.b16 %v644, %v643
        %653 = vst [vmem:[%s200] sm:$0xff] %v645
        %654 = vst [vmem:[%s200 + $0x8] sm:$0xff] %v646
        %655 = vst [vmem:[%s200 + $0x10] sm:$0xff] %v647
        %656 = vst [vmem:[%s200 + $0x18] sm:$0xff] %v648
        %s657 = sand.u32 %s117, 1
        %s658 = sand.u32 %s117, 1
        %s659 = smul.addr %s658, 32
        %s660 = scalar_lea.vmem [#allocation2], %s659
        // Predicated region
        $region37: #{upsampler_block.3} parent=35 // pred_check
          %p661 = pneg %p127
        $region38: #{upsampler_block.3} parent=35 // pred_check_branch
          %663 = sbr.rel (%p661) target = $region40
        $region39: #{upsampler_block.3} parent=35 // pred_region
          %s664 = smul.u32 2, %s15
          %s665 = smul.addr %s664, 4
          %s666 = scalar_lea.vmem %s4, %s665
          // Predicated region
          $region41: #{upsampler_block.3} parent=39 // pred_check
            _
          $region42: #{upsampler_block.3} parent=39 // pred_check_branch
            %668 = sbr.rel (0) target = $region44
          $region43: #{upsampler_block.3} parent=39 // pred_region
            // Predicated region
            $region45: #{upsampler_block.3} parent=43 // pred_check
              _
            $region46: #{upsampler_block.3} parent=43 // pred_check_branch
              %670 = sbr.rel (0) target = $region48
            $region47: #{upsampler_block.3} parent=43 // pred_region
              // Predicated region
              $region60: #{upsampler_block.3} parent=47 // pred_check
                _
              $region61: #{upsampler_block.3} parent=47 // pred_check_branch
                %691 = sbr.rel (0) target = $region63
              $region62: #{upsampler_block.3} parent=47 // pred_region
                loop: start=0, step=1, limit=1
                $region64: #{upsampler_block.3} parent=62 // loop_pre_header
                  _
                $region65: #{upsampler_block.3} parent=62 // loop_header
                  %s693 = sphi 0, %s697
                  %p694 = scmp.ge.s32.totalorder %s693, 1
                  %s698 = sphi %s660, %s660
                  %s699 = sphi %s666, %s666
                $region66: #{upsampler_block.3} parent=62 // loop_header_branch
                  %696 = sbr.rel (%p694) target = $region70
                $region67: #{upsampler_block.3} parent=62 // loop_body
                  %v700 = vld [vmem:[%s698] sm:$0xff]
                  %701 = vst [vmem:[%s699] sm:$0xff] %v700
                  %v702 = vld [vmem:[%s698 + $0x8] sm:$0xff]
                  %703 = vst [vmem:[%s699 + $0x18] sm:$0xff] %v702
                  %v704 = vld [vmem:[%s698 + $0x10] sm:$0xff]
                  %705 = vst [vmem:[%s699 + $0x30] sm:$0xff] %v704
                  %v706 = vld [vmem:[%s698 + $0x18] sm:$0xff]
                  %707 = vst [vmem:[%s699 + $0x48] sm:$0xff] %v706
                $region68: #{upsampler_block.3} parent=62 // loop_footer
                  %s697 = sadd.s32 1, %s693
                $region69: #{upsampler_block.3} parent=62 // loop_footer_branch
                  %692 = sbr.rel target = $region65
                $region70: #{upsampler_block.3} parent=62 // loop_exit
                  _
              $region63: #{upsampler_block.3} parent=47 // pred_fallthru
                _
              // Predicated region
              $region71: #{upsampler_block.3} parent=47 // pred_check
                _
              $region72: #{upsampler_block.3} parent=47 // pred_check_branch
                %709 = sbr.rel target = $region74
              $region73: #{upsampler_block.3} parent=47 // pred_region
                _
              $region74: #{upsampler_block.3} parent=47 // pred_fallthru
                _
            $region48: #{upsampler_block.3} parent=43 // pred_fallthru
              _
            // Predicated region
            $region49: #{upsampler_block.3} parent=43 // pred_check
              _
            $region50: #{upsampler_block.3} parent=43 // pred_check_branch
              %672 = sbr.rel target = $region52
            $region51: #{upsampler_block.3} parent=43 // pred_region
              loop: start=0, step=1, limit=1
              $region53: #{upsampler_block.3} parent=51 // loop_pre_header
                _
              $region54: #{upsampler_block.3} parent=51 // loop_header
                %s675 = sphi 0, %s679
                %p676 = scmp.ge.s32.totalorder %s675, 1
                %s680 = sphi %s660, %s660
                %s681 = sphi %s666, %s666
              $region55: #{upsampler_block.3} parent=51 // loop_header_branch
                %678 = sbr.rel (%p676) target = $region59
              $region56: #{upsampler_block.3} parent=51 // loop_body
                %v682 = vld [vmem:[%s680] sm:$0xff]
                %683 = vst [vmem:[%s681] sm:$0xff] %v682
                %v684 = vld [vmem:[%s680 + $0x8] sm:$0xff]
                %685 = vst [vmem:[%s681 + $0x18] sm:$0xff] %v684
                %v686 = vld [vmem:[%s680 + $0x10] sm:$0xff]
                %687 = vst [vmem:[%s681 + $0x30] sm:$0xff] %v686
                %v688 = vld [vmem:[%s680 + $0x18] sm:$0xff]
                %689 = vst [vmem:[%s681 + $0x48] sm:$0xff] %v688
              $region57: #{upsampler_block.3} parent=51 // loop_footer
                %s679 = sadd.s32 1, %s675
              $region58: #{upsampler_block.3} parent=51 // loop_footer_branch
                %674 = sbr.rel target = $region54
              $region59: #{upsampler_block.3} parent=51 // loop_exit
                _
            $region52: #{upsampler_block.3} parent=43 // pred_fallthru
              _
          $region44: #{upsampler_block.3} parent=39 // pred_fallthru
            _
          %710 = vnop
        $region40: #{upsampler_block.3} parent=35 // pred_fallthru
          _
      $region36: #{upsampler_block.3} parent=5 // pred_fallthru
        _
      %p711 = scmp.le.s32.totalorder 2, %s10
      // Predicated region
      $region75: #{upsampler_block.3} parent=5 // pred_check
        %p712 = pneg %p711
      $region76: #{upsampler_block.3} parent=5 // pred_check_branch
        %714 = sbr.rel (%p712) target = $region78
      $region77: #{upsampler_block.3} parent=5 // pred_region
        %s715 = ssub.s32 %s10, 2
        // Predicated region
        $region79: #{upsampler_block.3} parent=77 // pred_check
          %p716 = pneg %p133
        $region80: #{upsampler_block.3} parent=77 // pred_check_branch
          %718 = sbr.rel (%p716) target = $region82
        $region81: #{upsampler_block.3} parent=77 // pred_region
          %s719 = sand.u32 %s118, 1
          %s720 = sand.u32 %s118, 1
          %s721 = smul.addr %s720, 32
          %s722 = scalar_lea.vmem [#allocation2], %s721
        $region82: #{upsampler_block.3} parent=77 // pred_fallthru
          _
      $region78: #{upsampler_block.3} parent=5 // pred_fallthru
        _
    $region6: #{upsampler_block.3} parent=1 // loop_footer
      %s14 = sadd.s32 1, %s10
    $region7: #{upsampler_block.3} parent=1 // loop_footer_branch
      %9 = sbr.rel target = $region3
    $region8: #{upsampler_block.3} parent=1 // loop_exit
      _

</llo_original>
